<compile_context>
chip_gen: v7x
topology: tpu7x:2x2x1
jax: 0.10.0
libtpu: 0.0.40
codegen_flags: <defaults>
</compile_context>

<pallas_src>
import functools

import jax
import jax.numpy as jnp
from jax.experimental import pallas as pl
from jax.experimental.pallas import tpu as pltpu


# ----------------------------- arch helpers (same as torch reference) -------
def get_layer_sizes_from_arch(arch):
    return [(m, n) for m, n in zip(arch[:-1], arch[1:])]


def get_num_weights_from_arch(arch):
    return sum((m + 1) * n for m, n in get_layer_sizes_from_arch(arch))


# ----------------------------- fused sampling + MLP kernel -------------------
def _make_bnn_fused_kernel(layer_sizes, s_blk, batch, d_in):
    num_layers = len(layer_sizes)

    def kernel(x_ref, eps_ref, mean_ref, std_ref, sampled_ref, f_ref):
        # ---- reparameterized weight sample for this block of samples -------
        # eps: (S, W); mean/std: (1, W) broadcast over sublanes.
        sampled = eps_ref[...] * std_ref[...] + mean_ref[...]         # (S, W) f32
        sampled_ref[...] = sampled.astype(sampled_ref.dtype)

        # ---- per-sample MLP (samples batched inside one grid step) ---------
        # h: (S, B, d) -- broadcast shared inputs across the sample block.
        h = jnp.broadcast_to(x_ref[...][None, :, :], (s_blk, batch, d_in))

        off = 0
        out = h
        for li, (m, n) in enumerate(layer_sizes):
            w_flat = sampled[:, off:off + m * n]                      # (S, m*n)
            b_flat = sampled[:, off + m * n:off + (m + 1) * n]        # (S, n)
            off += (m + 1) * n

            W = w_flat.reshape(s_blk, m, n)                           # (S, m, n)
            b = b_flat.reshape(s_blk, 1, n)                           # (S, 1, n)

            if li == num_layers - 1:
                # Only column 0 of the last layer is ever used downstream.
                W = W[:, :, 0:1]                                      # (S, m, 1)
                b = b[:, :, 0:1]                                      # (S, 1, 1)

            out = jnp.einsum('sbm,smn->sbn', h, W,
                             preferred_element_type=jnp.float32) + b
            if li < num_layers - 1:
                h = jnp.maximum(out, 0.0)                             # ReLU

        # Lane-dense store: samples on the lane dimension.
        f_ref[...] = jnp.transpose(out[:, :, 0]).astype(f_ref.dtype)  # (B, S)

    return kernel


def bnn_forward(x, mean, log_std, arch, N_samples, key):
    """Replicates BNN_wrapper.forward(inputs, N_samples, act=relu)."""
    layer_sizes = get_layer_sizes_from_arch(arch)
    num_weights = get_num_weights_from_arch(arch)
    B, D = x.shape

    # ---- sample-block sizing ------------------------------------------------
    # Output f block is (B, S_BLK) with S_BLK on lanes, so S_BLK must either be a
    # multiple of 128 or equal the (padded) full sample dim.
    if N_samples <= 128:
        s_blk = ((N_samples + 7) // 8) * 8
        n_pad = s_blk
    else:
        s_blk = 128
        n_pad = ((N_samples + 127) // 128) * 128
    # NOTE: for very large num_weights the num_weights axis should also be tiled
    # (and vmem_limit_bytes set, esp. on v7x's 64 MiB VMEM); fine at these sizes.

    # epsilons ~ N(0, 1) (torch uses torch.randn); padded rows are discarded below.
    eps = jax.random.normal(key, (n_pad, num_weights), dtype=jnp.float32)

    mean2 = mean.reshape(1, num_weights).astype(jnp.float32)
    std2 = jnp.exp(log_std).reshape(1, num_weights).astype(jnp.float32)  # exp hoisted
    x32 = x.astype(jnp.float32)

    kernel = _make_bnn_fused_kernel(layer_sizes, s_blk, B, D)
    grid = (n_pad // s_blk,)

    sampled_pad, f_pad = pl.pallas_call(
        kernel,
        out_shape=(
            jax.ShapeDtypeStruct((n_pad, num_weights), jnp.float32),
            jax.ShapeDtypeStruct((B, n_pad), jnp.float32),
        ),
        grid=grid,
        in_specs=[
            pl.BlockSpec((B, D), lambda s: (0, 0)),                  # x (shared)
            pl.BlockSpec((s_blk, num_weights), lambda s: (s, 0)),    # eps block
            pl.BlockSpec((1, num_weights), lambda s: (0, 0)),        # mean
            pl.BlockSpec((1, num_weights), lambda s: (0, 0)),        # std
        ],
        out_specs=(
            pl.BlockSpec((s_blk, num_weights), lambda s: (s, 0)),    # sampled weights
            pl.BlockSpec((B, s_blk), lambda s: (0, s)),              # f, lane-dense
        ),
        compiler_params=pltpu.CompilerParams(
            dimension_semantics=("parallel",)),
    )(x32, eps, mean2, std2)

    f_bnn = jnp.transpose(f_pad[:, :N_samples])          # (N_samples, B)
    sampled = sampled_pad[:N_samples]                    # (N_samples, num_weights)
    return f_bnn, sampled


# ----------------------------- demo -----------------------------------------
if __name__ == "__main__":
    arch = [4, 16, 16, 1]          # small MLP architecture
    B = 8                          # batch size
    N_samples = 3                  # number of weight samples

    num_weights = get_num_weights_from_arch(arch)

    key = jax.random.PRNGKey(0)
    k_mean, k_x, k_eps = jax.random.split(key, 3)

    # deterministic "parameters" (torch: mean = randn(num_weights), log_std = -5 * ones)
    mean = jax.random.normal(k_mean, (num_weights,), dtype=jnp.float32)
    log_std = jnp.full((num_weights,), -5.0, dtype=jnp.float32)

    # deterministic inputs
    x = jax.random.normal(k_x, (B, arch[0]), dtype=jnp.float32)

    f_bnn, sampled_weights = bnn_forward(x, mean, log_std, arch, N_samples, k_eps)
    jax.block_until_ready((f_bnn, sampled_weights))

    assert f_bnn.shape == (N_samples, B)
    assert sampled_weights.shape == (N_samples, num_weights)
    print("KERNEL_OK")
</pallas_src>

<mosaic_0001>
module attributes {stable_mosaic.version = 11 : i64} {
  func.func @kernel(%arg0: i32, %arg1: memref<8x4xf32, #tpu.memory_space<vmem>>, %arg2: memref<8x369xf32, #tpu.memory_space<vmem>>, %arg3: memref<1x369xf32, #tpu.memory_space<vmem>>, %arg4: memref<1x369xf32, #tpu.memory_space<vmem>>, %arg5: memref<8x369xf32, #tpu.memory_space<vmem>>, %arg6: memref<8x8xf32, #tpu.memory_space<vmem>>) attributes {dimension_semantics = [#tpu.dimension_semantics<parallel>], iteration_bounds = array<i64: 1>, scalar_prefetch = 0 : i64, scratch_operands = 0 : i64, tpu.core_type = #tpu.core_type<tc>, window_params = [{pipeline_mode = #tpu.pipeline_mode<synchronous>, transform_indices = @transform_0, window_bounds = array<i64: 8, 4>}, {transform_indices = @transform_1, window_bounds = array<i64: 8, 369>}, {pipeline_mode = #tpu.pipeline_mode<synchronous>, transform_indices = @transform_2, window_bounds = array<i64: 1, 369>}, {pipeline_mode = #tpu.pipeline_mode<synchronous>, transform_indices = @transform_3, window_bounds = array<i64: 1, 369>}, {transform_indices = @transform_4, window_bounds = array<i64: 8, 369>}, {transform_indices = @transform_5, window_bounds = array<i64: 8, 8>}]} {
    %c0 = arith.constant 0 : index
    %c0_0 = arith.constant 0 : index
    %0 = vector.load %arg2[%c0, %c0_0] : memref<8x369xf32, #tpu.memory_space<vmem>>, vector<8x369xf32>
    %c0_1 = arith.constant 0 : index
    %c0_2 = arith.constant 0 : index
    %1 = vector.load %arg4[%c0_1, %c0_2] : memref<1x369xf32, #tpu.memory_space<vmem>>, vector<1x369xf32>
    %2 = vector.broadcast %1 : vector<1x369xf32> to vector<8x369xf32>
    %3 = arith.mulf %0, %2 : vector<8x369xf32>
    %c0_3 = arith.constant 0 : index
    %c0_4 = arith.constant 0 : index
    %4 = vector.load %arg3[%c0_3, %c0_4] : memref<1x369xf32, #tpu.memory_space<vmem>>, vector<1x369xf32>
    %5 = vector.broadcast %4 : vector<1x369xf32> to vector<8x369xf32>
    %6 = arith.addf %3, %5 : vector<8x369xf32>
    %c0_5 = arith.constant 0 : index
    %c0_6 = arith.constant 0 : index
    %7 = vector.load %arg5[%c0_5, %c0_6] : memref<8x369xf32, #tpu.memory_space<vmem>>, vector<8x369xf32>
    tpu.vector_store %arg5[%c0_5, %c0_6], %6 {strides = array<i32>} : memref<8x369xf32, #tpu.memory_space<vmem>>, vector<8x369xf32>,
    %c0_7 = arith.constant 0 : index
    %c0_8 = arith.constant 0 : index
    %8 = vector.load %arg1[%c0_7, %c0_8] : memref<8x4xf32, #tpu.memory_space<vmem>>, vector<8x4xf32>
    %9 = vector.shape_cast %8 : vector<8x4xf32> to vector<1x8x4xf32>
    %10 = vector.shape_cast %9 : vector<1x8x4xf32> to vector<1x8x4xf32>
    %11 = vector.broadcast %10 : vector<1x8x4xf32> to vector<8x8x4xf32>
    %12 = vector.extract_strided_slice %6 {offsets = [0, 0], sizes = [8, 64], strides = [1, 1]} : vector<8x369xf32> to vector<8x64xf32>
    %13 = vector.extract_strided_slice %6 {offsets = [0, 64], sizes = [8, 16], strides = [1, 1]} : vector<8x369xf32> to vector<8x16xf32>
    %14 = vector.shape_cast %12 : vector<8x64xf32> to vector<8x4x16xf32>
    %15 = vector.shape_cast %13 : vector<8x16xf32> to vector<8x1x16xf32>
    "tpu.trace_start"() <{level = 10 : i32, message = "sbm,smn->sbn"}> : () -> ()
    %cst = arith.constant dense<0.000000e+00> : vector<8x8x16xf32>
    %16 = tpu.matmul %11, %14, %cst {dimension_numbers = #tpu.dot_dimension_numbers<[2], [1], [1], [2], [0, 0, 0, 1, 1, 2], [0], [0]>} : vector<8x8x4xf32>, vector<8x4x16xf32>, vector<8x8x16xf32> -> vector<8x8x16xf32>
    "tpu.trace_stop"() : () -> ()
    %17 = vector.broadcast %15 : vector<8x1x16xf32> to vector<8x8x16xf32>
    %18 = arith.addf %16, %17 : vector<8x8x16xf32>
    %cst_9 = arith.constant 0.000000e+00 : f32
    %19 = vector.broadcast %cst_9 : f32 to vector<8x8x16xf32>
    %20 = arith.maximumf %18, %19 : vector<8x8x16xf32>
    %21 = vector.extract_strided_slice %6 {offsets = [0, 80], sizes = [8, 256], strides = [1, 1]} : vector<8x369xf32> to vector<8x256xf32>
    %22 = vector.extract_strided_slice %6 {offsets = [0, 336], sizes = [8, 16], strides = [1, 1]} : vector<8x369xf32> to vector<8x16xf32>
    %23 = vector.shape_cast %21 : vector<8x256xf32> to vector<8x16x16xf32>
    %24 = vector.shape_cast %22 : vector<8x16xf32> to vector<8x1x16xf32>
    "tpu.trace_start"() <{level = 10 : i32, message = "sbm,smn->sbn"}> : () -> ()
    %cst_10 = arith.constant dense<0.000000e+00> : vector<8x8x16xf32>
    %25 = tpu.matmul %20, %23, %cst_10 {dimension_numbers = #tpu.dot_dimension_numbers<[2], [1], [1], [2], [0, 0, 0, 1, 1, 2], [0], [0]>} : vector<8x8x16xf32>, vector<8x16x16xf32>, vector<8x8x16xf32> -> vector<8x8x16xf32>
    "tpu.trace_stop"() : () -> ()
    %26 = vector.broadcast %24 : vector<8x1x16xf32> to vector<8x8x16xf32>
    %27 = arith.addf %25, %26 : vector<8x8x16xf32>
    %cst_11 = arith.constant 0.000000e+00 : f32
    %28 = vector.broadcast %cst_11 : f32 to vector<8x8x16xf32>
    %29 = arith.maximumf %27, %28 : vector<8x8x16xf32>
    %30 = vector.extract_strided_slice %6 {offsets = [0, 352], sizes = [8, 16], strides = [1, 1]} : vector<8x369xf32> to vector<8x16xf32>
    %31 = vector.extract_strided_slice %6 {offsets = [0, 368], sizes = [8, 1], strides = [1, 1]} : vector<8x369xf32> to vector<8x1xf32>
    %32 = vector.shape_cast %30 : vector<8x16xf32> to vector<8x16x1xf32>
    %33 = vector.shape_cast %31 : vector<8x1xf32> to vector<8x1x1xf32>
    "tpu.trace_start"() <{level = 10 : i32, message = "sbm,smn->sbn"}> : () -> ()
    %cst_12 = arith.constant dense<0.000000e+00> : vector<8x8x1xf32>
    %34 = tpu.matmul %29, %32, %cst_12 {dimension_numbers = #tpu.dot_dimension_numbers<[2], [1], [1], [2], [0, 0, 0, 1, 1, 2], [0], [0]>} : vector<8x8x16xf32>, vector<8x16x1xf32>, vector<8x8x1xf32> -> vector<8x8x1xf32>
    "tpu.trace_stop"() : () -> ()
    %35 = vector.broadcast %33 : vector<8x1x1xf32> to vector<8x8x1xf32>
    %36 = arith.addf %34, %35 : vector<8x8x1xf32>
    %37 = vector.shape_cast %36 : vector<8x8x1xf32> to vector<8x8xf32>
    %38 = tpu.transpose %37, [1, 0] : vector<8x8xf32> -> vector<8x8xf32>
    %c0_13 = arith.constant 0 : index
    %c0_14 = arith.constant 0 : index
    %39 = vector.load %arg6[%c0_13, %c0_14] : memref<8x8xf32, #tpu.memory_space<vmem>>, vector<8x8xf32>
    tpu.vector_store %arg6[%c0_13, %c0_14], %38 {strides = array<i32>} : memref<8x8xf32, #tpu.memory_space<vmem>>, vector<8x8xf32>,
    return
  }
  func.func @transform_0(%arg0: i32) -> (i32, i32) {
    %c0_i32 = arith.constant 0 : i32
    %c0_i32_0 = arith.constant 0 : i32
    %c0_i32_1 = arith.constant 0 : i32
    return %c0_i32, %c0_i32_0 : i32, i32
  }
  func.func @transform_1(%arg0: i32) -> (i32, i32) {
    %c0_i32 = arith.constant 0 : i32
    %c0_i32_0 = arith.constant 0 : i32
    return %arg0, %c0_i32 : i32, i32
  }
  func.func @transform_2(%arg0: i32) -> (i32, i32) {
    %c0_i32 = arith.constant 0 : i32
    %c0_i32_0 = arith.constant 0 : i32
    %c0_i32_1 = arith.constant 0 : i32
    return %c0_i32, %c0_i32_0 : i32, i32
  }
  func.func @transform_3(%arg0: i32) -> (i32, i32) {
    %c0_i32 = arith.constant 0 : i32
    %c0_i32_0 = arith.constant 0 : i32
    %c0_i32_1 = arith.constant 0 : i32
    return %c0_i32, %c0_i32_0 : i32, i32
  }
  func.func @transform_4(%arg0: i32) -> (i32, i32) {
    %c0_i32 = arith.constant 0 : i32
    %c0_i32_0 = arith.constant 0 : i32
    return %arg0, %c0_i32 : i32, i32
  }
  func.func @transform_5(%arg0: i32) -> (i32, i32) {
    %c0_i32 = arith.constant 0 : i32
    %c0_i32_0 = arith.constant 0 : i32
    return %c0_i32, %arg0 : i32, i32
  }
}

</mosaic_0001>

<llo_original>
// kernel: tpu_custom_call.1
$region0: #{tpu_custom_call.1}
  #allocation0 [shape = 'u32[]', space=smem, size = 0x4, offset = 0x4, fixed_abs, tag = 'smem constant byte address 0x4 - core index']
  #allocation1 [shape = 'u32[144,128]{1,0:T(1,128)}', space=vmem, size = 0x12000, scoped, tag = 'internal scratch']
  %s0 = inlined_call_operand.vmem [shape: f32[8,4], index: 0, kind: input, shape index: {}]
  %s1 = inlined_call_operand.hbm [shape: f32[8,369], index: 1, kind: input, shape index: {}]
  %s2 = inlined_call_operand.vmem [shape: f32[1,369], index: 2, kind: input, shape index: {}]
  %s3 = inlined_call_operand.vmem [shape: f32[1,369], index: 3, kind: input, shape index: {}]
  %s4 = inlined_call_operand.hbm [shape: f32[8,369], index: 4, kind: output, shape index: {0}]
  %s5 = inlined_call_operand.hbm [shape: f32[8,8], index: 5, kind: output, shape index: {1}]
  %6 = xla_tuple %s4, %s5
  %s7 = sld [smem:[#allocation0]]
  $region38: #{tpu_custom_call.1} parent=0
    _
  %s9 = ssub.s32 1, %s7
  %s10 = scalar_select 0, %s9, %s7
  $region1: #{tpu_custom_call.1} parent=0
    #allocation2 [shape = 'u8[12288]{0}', space=vmem, size = 0x3000, scoped, tag = 'input window, operand 1, single buffered']
    #allocation3 [shape = 's32[1]{0}', space=sflag, size = 0x4, scoped, tag = 'scoped memory for tpu_custom_call.1']
    #allocation4 [shape = 's32[1]{0}', space=sflag, size = 0x4, scoped, tag = 'scoped memory for tpu_custom_call.1']
    #allocation5 [shape = 'u8[12288]{0}', space=vmem, size = 0x3000, scoped, tag = 'output window, operand 0, single buffered']
    #allocation6 [shape = 'u8[4096]{0}', space=vmem, size = 0x1000, scoped, tag = 'output window, operand 1, single buffered']
    #allocation7 [shape = 's32[1]{0}', space=sflag, size = 0x4, scoped, tag = 'scoped memory for tpu_custom_call.1']
    %11 = vsyncpa [#allocation3], 0
    %12 = vsyncpa [#allocation4], 0
    %13 = vsyncpa [#allocation7], 0
    // Predicated region
    $region2: #{tpu_custom_call.1} parent=1 // pred_check
      _
    $region3: #{tpu_custom_call.1} parent=1 // pred_check_branch
      %15 = sbr.rel (0) target = $region5
    $region4: #{tpu_custom_call.1} parent=1 // pred_region
      _
    $region5: #{tpu_custom_call.1} parent=1 // pred_fallthru
      _
    // Predicated region
    $region6: #{tpu_custom_call.1} parent=1 // pred_check
      _
    $region7: #{tpu_custom_call.1} parent=1 // pred_check_branch
      %17 = sbr.rel (0) target = $region9
    $region8: #{tpu_custom_call.1} parent=1 // pred_region
      %s19 = ssub.s32 384, 384
      %20 = vsyncadd [#allocation3], %s19
      %s22 = sshll.u32 [#allocation2], 4
      %s23 = int_to_ptr.vmem [resolvable:$true] %s22
      %25 = dma.hbm_to_vmem [thread:$0]  %s1, 384, %s23, [#allocation3]
    $region9: #{tpu_custom_call.1} parent=1 // pred_fallthru
      _
    // Predicated region
    $region10: #{tpu_custom_call.1} parent=1 // pred_check
      _
    $region11: #{tpu_custom_call.1} parent=1 // pred_check_branch
      %27 = sbr.rel (0) target = $region13
    $region12: #{tpu_custom_call.1} parent=1 // pred_region
      _
    $region13: #{tpu_custom_call.1} parent=1 // pred_fallthru
      _
    // Predicated region
    $region14: #{tpu_custom_call.1} parent=1 // pred_check
      _
    $region15: #{tpu_custom_call.1} parent=1 // pred_check_branch
      %29 = sbr.rel (0) target = $region17
    $region16: #{tpu_custom_call.1} parent=1 // pred_region
      _
    $region17: #{tpu_custom_call.1} parent=1 // pred_fallthru
      _
    // Predicated region
    $region18: #{tpu_custom_call.1} parent=1 // pred_check
      _
    $region19: #{tpu_custom_call.1} parent=1 // pred_check_branch
      %31 = sbr.rel (0) target = $region21
    $region20: #{tpu_custom_call.1} parent=1 // pred_region
      %32 = dma.done [#allocation3], 384
    $region21: #{tpu_custom_call.1} parent=1 // pred_fallthru
      _
    %v33 = vld [vmem:[#allocation2] sm:$0xff]
    %v34 = vld [vmem:[#allocation2 + $0x8] sm:$0xff]
    %v35 = vld [vmem:[#allocation2 + $0x10] sm:$0xff]
    %v36 = vld [vmem:[%s3] sm:$0x7]
    %v38 = vlaneseq
    %v39 = vshrl.u32 %v38, 7
    %v40 = vsub.s32 0, %v39
    %v41 = vrot.slane %v36, %v40
    %v42 = vlaneseq
    %v43 = vshrl.u32 %v42, 7
    %v44 = vsub.s32 1, %v43
    %v45 = vrot.slane %v36, %v44
    %v46 = vlaneseq
    %v47 = vshrl.u32 %v46, 7
    %v48 = vsub.s32 2, %v47
    %v49 = vrot.slane %v36, %v48
    %v53 = vmul.f32 %v33, %v41
    %v54 = vmul.f32 %v34, %v45
    %v55 = vmul.f32 %v35, %v49
    %v56 = vld [vmem:[%s2] sm:$0x7]
    %v58 = vlaneseq
    %v59 = vshrl.u32 %v58, 7
    %v60 = vsub.s32 0, %v59
    %v61 = vrot.slane %v56, %v60
    %v62 = vlaneseq
    %v63 = vshrl.u32 %v62, 7
    %v64 = vsub.s32 1, %v63
    %v65 = vrot.slane %v56, %v64
    %v66 = vlaneseq
    %v67 = vshrl.u32 %v66, 7
    %v68 = vsub.s32 2, %v67
    %v69 = vrot.slane %v56, %v68
    %v73 = vadd.f32 %v53, %v61
    %v74 = vadd.f32 %v54, %v65
    %v75 = vadd.f32 %v55, %v69
    %76 = vst [vmem:[#allocation5] sm:$0xff] %v73
    %77 = vst [vmem:[#allocation5 + $0x8] sm:$0xff] %v74
    %vm78 = vcmask 924672
    %79 = vst.msk [vmem:[#allocation5 + $0x10] sm:$0xff] %vm78, %v75
    %v80 = vld [vmem:[%s0] sm:$0xff]
    %82 = vrot.lane.b32.xlu0 %v73, 112
    %v83 = vpop.permute.xlu0 %82
    %85 = vrot.lane.b32.xlu0 %v73, 96
    %v86 = vpop.permute.xlu0 %85
    %88 = vrot.lane.b32.xlu0 %v73, 80
    %v89 = vpop.permute.xlu0 %88
    %v91 = vcombine.low %v73, %v86
    %v92 = vcombine.high %v73, %v86
    %v94 = vunpack.c.l.s4 1983009808
    %v95 = vunpack.c.0.s8 %v94
    %v96 = vlaneseq
    %v97 = vshrl.u32 %v96, 7
    %v98 = vsub.s32 %v95, %v97
    %v99 = vrot.slane %v91, %v98
    %v101 = vunpack.c.l.s4 1983009808
    %v102 = vunpack.c.0.s8 %v101
    %v103 = vlaneseq
    %v104 = vshrl.u32 %v103, 7
    %v105 = vsub.s32 %v102, %v104
    %v106 = vrot.slane %v92, %v105
    %v107 = vcombine.low %v83, %v89
    %v108 = vcombine.high %v83, %v89
    %v110 = vunpack.c.l.s4 1983009808
    %v111 = vunpack.c.0.s8 %v110
    %v112 = vlaneseq
    %v113 = vshrl.u32 %v112, 7
    %v114 = vsub.s32 %v111, %v113
    %v115 = vrot.slane %v107, %v114
    %v117 = vunpack.c.l.s4 1983009808
    %v118 = vunpack.c.0.s8 %v117
    %v119 = vlaneseq
    %v120 = vshrl.u32 %v119, 7
    %v121 = vsub.s32 %v118, %v120
    %v122 = vrot.slane %v108, %v121
    %v123 = vcombine.low %v99, %v115
    %v124 = vcombine.high %v99, %v115
    %v126 = vunpack.c.l.s4 1934713408
    %v127 = vunpack.c.0.s8 %v126
    %v128 = vlaneseq
    %v129 = vshrl.u32 %v128, 7
    %v130 = vsub.s32 %v127, %v129
    %v131 = vrot.slane %v123, %v130
    %v133 = vunpack.c.l.s4 1934713408
    %v134 = vunpack.c.0.s8 %v133
    %v135 = vlaneseq
    %v136 = vshrl.u32 %v135, 7
    %v137 = vsub.s32 %v134, %v136
    %v138 = vrot.slane %v124, %v137
    %v139 = vcombine.low %v106, %v122
    %v140 = vcombine.high %v106, %v122
    %v142 = vunpack.c.l.s4 1934713408
    %v143 = vunpack.c.0.s8 %v142
    %v144 = vlaneseq
    %v145 = vshrl.u32 %v144, 7
    %v146 = vsub.s32 %v143, %v145
    %v147 = vrot.slane %v139, %v146
    %v149 = vunpack.c.l.s4 1934713408
    %v150 = vunpack.c.0.s8 %v149
    %v151 = vlaneseq
    %v152 = vshrl.u32 %v151, 7
    %v153 = vsub.s32 %v150, %v152
    %v154 = vrot.slane %v140, %v153
    %v155 = vcombine.high %v131, 0.0
    %v156 = vcombine.high %v138, 0.0
    %v157 = vcombine.high %v147, 0.0
    %v158 = vcombine.high %v154, 0.0
    %v159 = vcombine.high %v73, %v73
    %v161 = vunpack.c.l.s4 1966171168
    %v162 = vunpack.c.0.s8 %v161
    %v163 = vlaneseq
    %v164 = vshrl.u32 %v163, 7
    %v165 = vsub.s32 %v162, %v164
    %v166 = vrot.slane %v73, %v165
    %v168 = vunpack.c.l.s4 1966171168
    %v169 = vunpack.c.0.s8 %v168
    %v170 = vlaneseq
    %v171 = vshrl.u32 %v170, 7
    %v172 = vsub.s32 %v169, %v171
    %v173 = vrot.slane %v159, %v172
    %v174 = vcombine.high %v166, %v166
    %v175 = vcombine.high %v173, %v173
    %v177 = vunpack.c.l.s4 1966171168
    %v178 = vunpack.c.0.s8 %v177
    %v179 = vlaneseq
    %v180 = vshrl.u32 %v179, 7
    %v181 = vsub.s32 %v178, %v180
    %v182 = vrot.slane %v166, %v181
    %v184 = vunpack.c.l.s4 1966171168
    %v185 = vunpack.c.0.s8 %v184
    %v186 = vlaneseq
    %v187 = vshrl.u32 %v186, 7
    %v188 = vsub.s32 %v185, %v187
    %v189 = vrot.slane %v173, %v188
    %v191 = vunpack.c.l.s4 1966171168
    %v192 = vunpack.c.0.s8 %v191
    %v193 = vlaneseq
    %v194 = vshrl.u32 %v193, 7
    %v195 = vsub.s32 %v192, %v194
    %v196 = vrot.slane %v174, %v195
    %v198 = vunpack.c.l.s4 1966171168
    %v199 = vunpack.c.0.s8 %v198
    %v200 = vlaneseq
    %v201 = vshrl.u32 %v200, 7
    %v202 = vsub.s32 %v199, %v201
    %v203 = vrot.slane %v175, %v202
    %v204 = vcombine.high %v182, %v182
    %v205 = vcombine.high %v189, %v189
    %v206 = vcombine.high %v196, %v196
    %v207 = vcombine.high %v203, %v203
    %v208 = vlaneseq
    %v209 = vshrl.u32 %v208, 7
    %v210 = vsub.s32 0, %v209
    %v211 = vrot.slane %v182, %v210
    %v212 = vlaneseq
    %v213 = vshrl.u32 %v212, 7
    %v214 = vsub.s32 0, %v213
    %v215 = vrot.slane %v196, %v214
    %v216 = vlaneseq
    %v217 = vshrl.u32 %v216, 7
    %v218 = vsub.s32 0, %v217
    %v219 = vrot.slane %v204, %v218
    %v220 = vlaneseq
    %v221 = vshrl.u32 %v220, 7
    %v222 = vsub.s32 0, %v221
    %v223 = vrot.slane %v206, %v222
    %v224 = vlaneseq
    %v225 = vshrl.u32 %v224, 7
    %v226 = vsub.s32 0, %v225
    %v227 = vrot.slane %v189, %v226
    %v228 = vlaneseq
    %v229 = vshrl.u32 %v228, 7
    %v230 = vsub.s32 0, %v229
    %v231 = vrot.slane %v203, %v230
    %v232 = vlaneseq
    %v233 = vshrl.u32 %v232, 7
    %v234 = vsub.s32 0, %v233
    %v235 = vrot.slane %v205, %v234
    %v236 = vlaneseq
    %v237 = vshrl.u32 %v236, 7
    %v238 = vsub.s32 0, %v237
    %v239 = vrot.slane %v207, %v238
    %240 = vrot.lane.b32.xlu0 %v211, 64
    %v241 = vpop.permute.xlu0 %240
    %vm243 = vcmask 31744
    %v245 = vsel %vm243, %v80, 0
    %vm247 = vcmask 1043456
    %v249 = vsel %vm247, %v131, 0
    %251 = vmatprep.subr.mxu0 0.0
    %252 = vmatpush1.msra.mxu0 %v249
    %253 = vmatprep.subr.mxu0 0.0
    %254 = vmatpush1.msra.mxu0 0.0
    %255 = vmatprep.subr.mxu0 0.0
    %256 = vmatpush1.msra.mxu0 0.0
    %257 = vmatprep.subr.mxu0 0.0
    %258 = vmatpush1.msra.mxu0 0.0
    %259 = vmatprep.subr.mxu0 0.0
    %260 = vmatpush1.msra.mxu0 0.0
    %261 = vmatprep.subr.mxu0 0.0
    %262 = vmatpush1.msra.mxu0 0.0
    %263 = vmatprep.subr.mxu0 0.0
    %264 = vmatpush1.msra.mxu0 0.0
    %265 = vmatprep.subr.mxu0 0.0
    %266 = vmatpush1.msra.mxu0 0.0
    %267 = vmatprep.subr.mxu0 0.0
    %268 = vmatpush1.msra.mxu0 0.0
    %269 = vmatprep.subr.mxu0 0.0
    %270 = vmatpush1.msra.mxu0 0.0
    %271 = vmatprep.subr.mxu0 0.0
    %272 = vmatpush1.msra.mxu0 0.0
    %273 = vmatprep.subr.mxu0 0.0
    %274 = vmatpush1.msra.mxu0 0.0
    %275 = vmatprep.subr.mxu0 0.0
    %276 = vmatpush1.msra.mxu0 0.0
    %277 = vmatprep.subr.mxu0 0.0
    %278 = vmatpush1.msra.mxu0 0.0
    %279 = vmatprep.subr.mxu0 0.0
    %280 = vmatpush1.msra.mxu0 0.0
    %281 = vmatprep.subr.mxu0 0.0
    %282 = vmatpush1.msra.mxu0 0.0
    %283 = vmatprep.subr.mxu0 0.0
    %284 = vmatpush1.msra.mxu0 0.0
    %285 = vmatprep.subr.mxu0 0.0
    %286 = vmatpush1.msra.mxu0 0.0
    %287 = vmatprep.subr.mxu0 0.0
    %288 = vmatpush1.msra.mxu0 0.0
    %289 = vmatprep.subr.mxu0 0.0
    %290 = vmatpush1.msra.mxu0 0.0
    %291 = vmatprep.subr.mxu0 0.0
    %292 = vmatpush1.msra.mxu0 0.0
    %293 = vmatprep.subr.mxu0 0.0
    %294 = vmatpush1.msra.mxu0 0.0
    %295 = vmatprep.subr.mxu0 0.0
    %296 = vmatpush1.msra.mxu0 0.0
    %297 = vmatprep.subr.mxu0 0.0
    %298 = vmatpush1.msra.mxu0 0.0
    %299 = vmatprep.subr.mxu0 0.0
    %300 = vmatpush1.msra.mxu0 0.0
    %301 = vmatprep.subr.mxu0 0.0
    %302 = vmatpush1.msra.mxu0 0.0
    %303 = vmatprep.subr.mxu0 0.0
    %304 = vmatpush1.msra.mxu0 0.0
    %305 = vmatprep.subr.mxu0 0.0
    %306 = vmatpush1.msra.mxu0 0.0
    %307 = vmatprep.subr.mxu0 0.0
    %308 = vmatpush1.msra.mxu0 0.0
    %309 = vmatprep.subr.mxu0 0.0
    %310 = vmatpush1.msra.mxu0 0.0
    %311 = vmatprep.subr.mxu0 0.0
    %312 = vmatpush1.msra.mxu0 0.0
    %313 = vmatprep.subr.mxu0 0.0
    %314 = vmatpush1.msra.mxu0 0.0
    %315 = vmatprep.mubr.f32.mxu0 0.0
    %316 = vmatmul.mubr.f32.gmra.mrb[0].mxu0 %v245
    %v317 = vpop.f32.mrb[0].mxu0
    %v318 = vadd.f32 %v241, %v317
    %v319 = vpop.f32.mrb[0].mxu0
    %320 = vdwg.mxu0
    %321 = vrot.lane.b32.xlu0 %v215, 64
    %v322 = vpop.permute.xlu0 %321
    %v325 = vsel %vm247, %v155, 0
    %327 = vmatprep.subr.mxu0 0.0
    %328 = vmatpush1.msra.mxu0 %v325
    %329 = vmatprep.subr.mxu0 0.0
    %330 = vmatpush1.msra.mxu0 0.0
    %331 = vmatprep.subr.mxu0 0.0
    %332 = vmatpush1.msra.mxu0 0.0
    %333 = vmatprep.subr.mxu0 0.0
    %334 = vmatpush1.msra.mxu0 0.0
    %335 = vmatprep.subr.mxu0 0.0
    %336 = vmatpush1.msra.mxu0 0.0
    %337 = vmatprep.subr.mxu0 0.0
    %338 = vmatpush1.msra.mxu0 0.0
    %339 = vmatprep.subr.mxu0 0.0
    %340 = vmatpush1.msra.mxu0 0.0
    %341 = vmatprep.subr.mxu0 0.0
    %342 = vmatpush1.msra.mxu0 0.0
    %343 = vmatprep.subr.mxu0 0.0
    %344 = vmatpush1.msra.mxu0 0.0
    %345 = vmatprep.subr.mxu0 0.0
    %346 = vmatpush1.msra.mxu0 0.0
    %347 = vmatprep.subr.mxu0 0.0
    %348 = vmatpush1.msra.mxu0 0.0
    %349 = vmatprep.subr.mxu0 0.0
    %350 = vmatpush1.msra.mxu0 0.0
    %351 = vmatprep.subr.mxu0 0.0
    %352 = vmatpush1.msra.mxu0 0.0
    %353 = vmatprep.subr.mxu0 0.0
    %354 = vmatpush1.msra.mxu0 0.0
    %355 = vmatprep.subr.mxu0 0.0
    %356 = vmatpush1.msra.mxu0 0.0
    %357 = vmatprep.subr.mxu0 0.0
    %358 = vmatpush1.msra.mxu0 0.0
    %359 = vmatprep.subr.mxu0 0.0
    %360 = vmatpush1.msra.mxu0 0.0
    %361 = vmatprep.subr.mxu0 0.0
    %362 = vmatpush1.msra.mxu0 0.0
    %363 = vmatprep.subr.mxu0 0.0
    %364 = vmatpush1.msra.mxu0 0.0
    %365 = vmatprep.subr.mxu0 0.0
    %366 = vmatpush1.msra.mxu0 0.0
    %367 = vmatprep.subr.mxu0 0.0
    %368 = vmatpush1.msra.mxu0 0.0
    %369 = vmatprep.subr.mxu0 0.0
    %370 = vmatpush1.msra.mxu0 0.0
    %371 = vmatprep.subr.mxu0 0.0
    %372 = vmatpush1.msra.mxu0 0.0
    %373 = vmatprep.subr.mxu0 0.0
    %374 = vmatpush1.msra.mxu0 0.0
    %375 = vmatprep.subr.mxu0 0.0
    %376 = vmatpush1.msra.mxu0 0.0
    %377 = vmatprep.subr.mxu0 0.0
    %378 = vmatpush1.msra.mxu0 0.0
    %379 = vmatprep.subr.mxu0 0.0
    %380 = vmatpush1.msra.mxu0 0.0
    %381 = vmatprep.subr.mxu0 0.0
    %382 = vmatpush1.msra.mxu0 0.0
    %383 = vmatprep.subr.mxu0 0.0
    %384 = vmatpush1.msra.mxu0 0.0
    %385 = vmatprep.subr.mxu0 0.0
    %386 = vmatpush1.msra.mxu0 0.0
    %387 = vmatprep.subr.mxu0 0.0
    %388 = vmatpush1.msra.mxu0 0.0
    %389 = vmatprep.subr.mxu0 0.0
    %390 = vmatpush1.msra.mxu0 0.0
    %391 = vmatprep.mubr.f32.mxu0 0.0
    %392 = vmatmul.mubr.f32.gmra.mrb[0].mxu0 %v245
    %v393 = vpop.f32.mrb[0].mxu0
    %v394 = vadd.f32 %v322, %v393
    %v395 = vpop.f32.mrb[0].mxu0
    %396 = vdwg.mxu0
    %397 = vrot.lane.b32.xlu0 %v219, 64
    %v398 = vpop.permute.xlu0 %397
    %v401 = vsel %vm247, %v138, 0
    %403 = vmatprep.subr.mxu0 0.0
    %404 = vmatpush1.msra.mxu0 %v401
    %405 = vmatprep.subr.mxu0 0.0
    %406 = vmatpush1.msra.mxu0 0.0
    %407 = vmatprep.subr.mxu0 0.0
    %408 = vmatpush1.msra.mxu0 0.0
    %409 = vmatprep.subr.mxu0 0.0
    %410 = vmatpush1.msra.mxu0 0.0
    %411 = vmatprep.subr.mxu0 0.0
    %412 = vmatpush1.msra.mxu0 0.0
    %413 = vmatprep.subr.mxu0 0.0
    %414 = vmatpush1.msra.mxu0 0.0
    %415 = vmatprep.subr.mxu0 0.0
    %416 = vmatpush1.msra.mxu0 0.0
    %417 = vmatprep.subr.mxu0 0.0
    %418 = vmatpush1.msra.mxu0 0.0
    %419 = vmatprep.subr.mxu0 0.0
    %420 = vmatpush1.msra.mxu0 0.0
    %421 = vmatprep.subr.mxu0 0.0
    %422 = vmatpush1.msra.mxu0 0.0
    %423 = vmatprep.subr.mxu0 0.0
    %424 = vmatpush1.msra.mxu0 0.0
    %425 = vmatprep.subr.mxu0 0.0
    %426 = vmatpush1.msra.mxu0 0.0
    %427 = vmatprep.subr.mxu0 0.0
    %428 = vmatpush1.msra.mxu0 0.0
    %429 = vmatprep.subr.mxu0 0.0
    %430 = vmatpush1.msra.mxu0 0.0
    %431 = vmatprep.subr.mxu0 0.0
    %432 = vmatpush1.msra.mxu0 0.0
    %433 = vmatprep.subr.mxu0 0.0
    %434 = vmatpush1.msra.mxu0 0.0
    %435 = vmatprep.subr.mxu0 0.0
    %436 = vmatpush1.msra.mxu0 0.0
    %437 = vmatprep.subr.mxu0 0.0
    %438 = vmatpush1.msra.mxu0 0.0
    %439 = vmatprep.subr.mxu0 0.0
    %440 = vmatpush1.msra.mxu0 0.0
    %441 = vmatprep.subr.mxu0 0.0
    %442 = vmatpush1.msra.mxu0 0.0
    %443 = vmatprep.subr.mxu0 0.0
    %444 = vmatpush1.msra.mxu0 0.0
    %445 = vmatprep.subr.mxu0 0.0
    %446 = vmatpush1.msra.mxu0 0.0
    %447 = vmatprep.subr.mxu0 0.0
    %448 = vmatpush1.msra.mxu0 0.0
    %449 = vmatprep.subr.mxu0 0.0
    %450 = vmatpush1.msra.mxu0 0.0
    %451 = vmatprep.subr.mxu0 0.0
    %452 = vmatpush1.msra.mxu0 0.0
    %453 = vmatprep.subr.mxu0 0.0
    %454 = vmatpush1.msra.mxu0 0.0
    %455 = vmatprep.subr.mxu0 0.0
    %456 = vmatpush1.msra.mxu0 0.0
    %457 = vmatprep.subr.mxu0 0.0
    %458 = vmatpush1.msra.mxu0 0.0
    %459 = vmatprep.subr.mxu0 0.0
    %460 = vmatpush1.msra.mxu0 0.0
    %461 = vmatprep.subr.mxu0 0.0
    %462 = vmatpush1.msra.mxu0 0.0
    %463 = vmatprep.subr.mxu0 0.0
    %464 = vmatpush1.msra.mxu0 0.0
    %465 = vmatprep.subr.mxu0 0.0
    %466 = vmatpush1.msra.mxu0 0.0
    %467 = vmatprep.mubr.f32.mxu0 0.0
    %468 = vmatmul.mubr.f32.gmra.mrb[0].mxu0 %v245
    %v469 = vpop.f32.mrb[0].mxu0
    %v470 = vadd.f32 %v398, %v469
    %v471 = vpop.f32.mrb[0].mxu0
    %472 = vdwg.mxu0
    %473 = vrot.lane.b32.xlu0 %v223, 64
    %v474 = vpop.permute.xlu0 %473
    %v477 = vsel %vm247, %v156, 0
    %479 = vmatprep.subr.mxu0 0.0
    %480 = vmatpush1.msra.mxu0 %v477
    %481 = vmatprep.subr.mxu0 0.0
    %482 = vmatpush1.msra.mxu0 0.0
    %483 = vmatprep.subr.mxu0 0.0
    %484 = vmatpush1.msra.mxu0 0.0
    %485 = vmatprep.subr.mxu0 0.0
    %486 = vmatpush1.msra.mxu0 0.0
    %487 = vmatprep.subr.mxu0 0.0
    %488 = vmatpush1.msra.mxu0 0.0
    %489 = vmatprep.subr.mxu0 0.0
    %490 = vmatpush1.msra.mxu0 0.0
    %491 = vmatprep.subr.mxu0 0.0
    %492 = vmatpush1.msra.mxu0 0.0
    %493 = vmatprep.subr.mxu0 0.0
    %494 = vmatpush1.msra.mxu0 0.0
    %495 = vmatprep.subr.mxu0 0.0
    %496 = vmatpush1.msra.mxu0 0.0
    %497 = vmatprep.subr.mxu0 0.0
    %498 = vmatpush1.msra.mxu0 0.0
    %499 = vmatprep.subr.mxu0 0.0
    %500 = vmatpush1.msra.mxu0 0.0
    %501 = vmatprep.subr.mxu0 0.0
    %502 = vmatpush1.msra.mxu0 0.0
    %503 = vmatprep.subr.mxu0 0.0
    %504 = vmatpush1.msra.mxu0 0.0
    %505 = vmatprep.subr.mxu0 0.0
    %506 = vmatpush1.msra.mxu0 0.0
    %507 = vmatprep.subr.mxu0 0.0
    %508 = vmatpush1.msra.mxu0 0.0
    %509 = vmatprep.subr.mxu0 0.0
    %510 = vmatpush1.msra.mxu0 0.0
    %511 = vmatprep.subr.mxu0 0.0
    %512 = vmatpush1.msra.mxu0 0.0
    %513 = vmatprep.subr.mxu0 0.0
    %514 = vmatpush1.msra.mxu0 0.0
    %515 = vmatprep.subr.mxu0 0.0
    %516 = vmatpush1.msra.mxu0 0.0
    %517 = vmatprep.subr.mxu0 0.0
    %518 = vmatpush1.msra.mxu0 0.0
    %519 = vmatprep.subr.mxu0 0.0
    %520 = vmatpush1.msra.mxu0 0.0
    %521 = vmatprep.subr.mxu0 0.0
    %522 = vmatpush1.msra.mxu0 0.0
    %523 = vmatprep.subr.mxu0 0.0
    %524 = vmatpush1.msra.mxu0 0.0
    %525 = vmatprep.subr.mxu0 0.0
    %526 = vmatpush1.msra.mxu0 0.0
    %527 = vmatprep.subr.mxu0 0.0
    %528 = vmatpush1.msra.mxu0 0.0
    %529 = vmatprep.subr.mxu0 0.0
    %530 = vmatpush1.msra.mxu0 0.0
    %531 = vmatprep.subr.mxu0 0.0
    %532 = vmatpush1.msra.mxu0 0.0
    %533 = vmatprep.subr.mxu0 0.0
    %534 = vmatpush1.msra.mxu0 0.0
    %535 = vmatprep.subr.mxu0 0.0
    %536 = vmatpush1.msra.mxu0 0.0
    %537 = vmatprep.subr.mxu0 0.0
    %538 = vmatpush1.msra.mxu0 0.0
    %539 = vmatprep.subr.mxu0 0.0
    %540 = vmatpush1.msra.mxu0 0.0
    %541 = vmatprep.subr.mxu0 0.0
    %542 = vmatpush1.msra.mxu0 0.0
    %543 = vmatprep.mubr.f32.mxu0 0.0
    %544 = vmatmul.mubr.f32.gmra.mrb[0].mxu0 %v245
    %v545 = vpop.f32.mrb[0].mxu0
    %v546 = vadd.f32 %v474, %v545
    %v547 = vpop.f32.mrb[0].mxu0
    %548 = vdwg.mxu0
    %549 = vrot.lane.b32.xlu0 %v227, 64
    %v550 = vpop.permute.xlu0 %549
    %v553 = vsel %vm247, %v147, 0
    %555 = vmatprep.subr.mxu0 0.0
    %556 = vmatpush1.msra.mxu0 %v553
    %557 = vmatprep.subr.mxu0 0.0
    %558 = vmatpush1.msra.mxu0 0.0
    %559 = vmatprep.subr.mxu0 0.0
    %560 = vmatpush1.msra.mxu0 0.0
    %561 = vmatprep.subr.mxu0 0.0
    %562 = vmatpush1.msra.mxu0 0.0
    %563 = vmatprep.subr.mxu0 0.0
    %564 = vmatpush1.msra.mxu0 0.0
    %565 = vmatprep.subr.mxu0 0.0
    %566 = vmatpush1.msra.mxu0 0.0
    %567 = vmatprep.subr.mxu0 0.0
    %568 = vmatpush1.msra.mxu0 0.0
    %569 = vmatprep.subr.mxu0 0.0
    %570 = vmatpush1.msra.mxu0 0.0
    %571 = vmatprep.subr.mxu0 0.0
    %572 = vmatpush1.msra.mxu0 0.0
    %573 = vmatprep.subr.mxu0 0.0
    %574 = vmatpush1.msra.mxu0 0.0
    %575 = vmatprep.subr.mxu0 0.0
    %576 = vmatpush1.msra.mxu0 0.0
    %577 = vmatprep.subr.mxu0 0.0
    %578 = vmatpush1.msra.mxu0 0.0
    %579 = vmatprep.subr.mxu0 0.0
    %580 = vmatpush1.msra.mxu0 0.0
    %581 = vmatprep.subr.mxu0 0.0
    %582 = vmatpush1.msra.mxu0 0.0
    %583 = vmatprep.subr.mxu0 0.0
    %584 = vmatpush1.msra.mxu0 0.0
    %585 = vmatprep.subr.mxu0 0.0
    %586 = vmatpush1.msra.mxu0 0.0
    %587 = vmatprep.subr.mxu0 0.0
    %588 = vmatpush1.msra.mxu0 0.0
    %589 = vmatprep.subr.mxu0 0.0
    %590 = vmatpush1.msra.mxu0 0.0
    %591 = vmatprep.subr.mxu0 0.0
    %592 = vmatpush1.msra.mxu0 0.0
    %593 = vmatprep.subr.mxu0 0.0
    %594 = vmatpush1.msra.mxu0 0.0
    %595 = vmatprep.subr.mxu0 0.0
    %596 = vmatpush1.msra.mxu0 0.0
    %597 = vmatprep.subr.mxu0 0.0
    %598 = vmatpush1.msra.mxu0 0.0
    %599 = vmatprep.subr.mxu0 0.0
    %600 = vmatpush1.msra.mxu0 0.0
    %601 = vmatprep.subr.mxu0 0.0
    %602 = vmatpush1.msra.mxu0 0.0
    %603 = vmatprep.subr.mxu0 0.0
    %604 = vmatpush1.msra.mxu0 0.0
    %605 = vmatprep.subr.mxu0 0.0
    %606 = vmatpush1.msra.mxu0 0.0
    %607 = vmatprep.subr.mxu0 0.0
    %608 = vmatpush1.msra.mxu0 0.0
    %609 = vmatprep.subr.mxu0 0.0
    %610 = vmatpush1.msra.mxu0 0.0
    %611 = vmatprep.subr.mxu0 0.0
    %612 = vmatpush1.msra.mxu0 0.0
    %613 = vmatprep.subr.mxu0 0.0
    %614 = vmatpush1.msra.mxu0 0.0
    %615 = vmatprep.subr.mxu0 0.0
    %616 = vmatpush1.msra.mxu0 0.0
    %617 = vmatprep.subr.mxu0 0.0
    %618 = vmatpush1.msra.mxu0 0.0
    %619 = vmatprep.mubr.f32.mxu0 0.0
    %620 = vmatmul.mubr.f32.gmra.mrb[0].mxu0 %v245
    %v621 = vpop.f32.mrb[0].mxu0
    %v622 = vadd.f32 %v550, %v621
    %v623 = vpop.f32.mrb[0].mxu0
    %624 = vdwg.mxu0
    %625 = vrot.lane.b32.xlu0 %v231, 64
    %v626 = vpop.permute.xlu0 %625
    %v629 = vsel %vm247, %v157, 0
    %631 = vmatprep.subr.mxu0 0.0
    %632 = vmatpush1.msra.mxu0 %v629
    %633 = vmatprep.subr.mxu0 0.0
    %634 = vmatpush1.msra.mxu0 0.0
    %635 = vmatprep.subr.mxu0 0.0
    %636 = vmatpush1.msra.mxu0 0.0
    %637 = vmatprep.subr.mxu0 0.0
    %638 = vmatpush1.msra.mxu0 0.0
    %639 = vmatprep.subr.mxu0 0.0
    %640 = vmatpush1.msra.mxu0 0.0
    %641 = vmatprep.subr.mxu0 0.0
    %642 = vmatpush1.msra.mxu0 0.0
    %643 = vmatprep.subr.mxu0 0.0
    %644 = vmatpush1.msra.mxu0 0.0
    %645 = vmatprep.subr.mxu0 0.0
    %646 = vmatpush1.msra.mxu0 0.0
    %647 = vmatprep.subr.mxu0 0.0
    %648 = vmatpush1.msra.mxu0 0.0
    %649 = vmatprep.subr.mxu0 0.0
    %650 = vmatpush1.msra.mxu0 0.0
    %651 = vmatprep.subr.mxu0 0.0
    %652 = vmatpush1.msra.mxu0 0.0
    %653 = vmatprep.subr.mxu0 0.0
    %654 = vmatpush1.msra.mxu0 0.0
    %655 = vmatprep.subr.mxu0 0.0
    %656 = vmatpush1.msra.mxu0 0.0
    %657 = vmatprep.subr.mxu0 0.0
    %658 = vmatpush1.msra.mxu0 0.0
    %659 = vmatprep.subr.mxu0 0.0
    %660 = vmatpush1.msra.mxu0 0.0
    %661 = vmatprep.subr.mxu0 0.0
    %662 = vmatpush1.msra.mxu0 0.0
    %663 = vmatprep.subr.mxu0 0.0
    %664 = vmatpush1.msra.mxu0 0.0
    %665 = vmatprep.subr.mxu0 0.0
    %666 = vmatpush1.msra.mxu0 0.0
    %667 = vmatprep.subr.mxu0 0.0
    %668 = vmatpush1.msra.mxu0 0.0
    %669 = vmatprep.subr.mxu0 0.0
    %670 = vmatpush1.msra.mxu0 0.0
    %671 = vmatprep.subr.mxu0 0.0
    %672 = vmatpush1.msra.mxu0 0.0
    %673 = vmatprep.subr.mxu0 0.0
    %674 = vmatpush1.msra.mxu0 0.0
    %675 = vmatprep.subr.mxu0 0.0
    %676 = vmatpush1.msra.mxu0 0.0
    %677 = vmatprep.subr.mxu0 0.0
    %678 = vmatpush1.msra.mxu0 0.0
    %679 = vmatprep.subr.mxu0 0.0
    %680 = vmatpush1.msra.mxu0 0.0
    %681 = vmatprep.subr.mxu0 0.0
    %682 = vmatpush1.msra.mxu0 0.0
    %683 = vmatprep.subr.mxu0 0.0
    %684 = vmatpush1.msra.mxu0 0.0
    %685 = vmatprep.subr.mxu0 0.0
    %686 = vmatpush1.msra.mxu0 0.0
    %687 = vmatprep.subr.mxu0 0.0
    %688 = vmatpush1.msra.mxu0 0.0
    %689 = vmatprep.subr.mxu0 0.0
    %690 = vmatpush1.msra.mxu0 0.0
    %691 = vmatprep.subr.mxu0 0.0
    %692 = vmatpush1.msra.mxu0 0.0
    %693 = vmatprep.subr.mxu0 0.0
    %694 = vmatpush1.msra.mxu0 0.0
    %695 = vmatprep.mubr.f32.mxu0 0.0
    %696 = vmatmul.mubr.f32.gmra.mrb[0].mxu0 %v245
    %v697 = vpop.f32.mrb[0].mxu0
    %v698 = vadd.f32 %v626, %v697
    %v699 = vpop.f32.mrb[0].mxu0
    %700 = vdwg.mxu0
    %701 = vrot.lane.b32.xlu0 %v235, 64
    %v702 = vpop.permute.xlu0 %701
    %v705 = vsel %vm247, %v154, 0
    %707 = vmatprep.subr.mxu0 0.0
    %708 = vmatpush1.msra.mxu0 %v705
    %709 = vmatprep.subr.mxu0 0.0
    %710 = vmatpush1.msra.mxu0 0.0
    %711 = vmatprep.subr.mxu0 0.0
    %712 = vmatpush1.msra.mxu0 0.0
    %713 = vmatprep.subr.mxu0 0.0
    %714 = vmatpush1.msra.mxu0 0.0
    %715 = vmatprep.subr.mxu0 0.0
    %716 = vmatpush1.msra.mxu0 0.0
    %717 = vmatprep.subr.mxu0 0.0
    %718 = vmatpush1.msra.mxu0 0.0
    %719 = vmatprep.subr.mxu0 0.0
    %720 = vmatpush1.msra.mxu0 0.0
    %721 = vmatprep.subr.mxu0 0.0
    %722 = vmatpush1.msra.mxu0 0.0
    %723 = vmatprep.subr.mxu0 0.0
    %724 = vmatpush1.msra.mxu0 0.0
    %725 = vmatprep.subr.mxu0 0.0
    %726 = vmatpush1.msra.mxu0 0.0
    %727 = vmatprep.subr.mxu0 0.0
    %728 = vmatpush1.msra.mxu0 0.0
    %729 = vmatprep.subr.mxu0 0.0
    %730 = vmatpush1.msra.mxu0 0.0
    %731 = vmatprep.subr.mxu0 0.0
    %732 = vmatpush1.msra.mxu0 0.0
    %733 = vmatprep.subr.mxu0 0.0
    %734 = vmatpush1.msra.mxu0 0.0
    %735 = vmatprep.subr.mxu0 0.0
    %736 = vmatpush1.msra.mxu0 0.0
    %737 = vmatprep.subr.mxu0 0.0
    %738 = vmatpush1.msra.mxu0 0.0
    %739 = vmatprep.subr.mxu0 0.0
    %740 = vmatpush1.msra.mxu0 0.0
    %741 = vmatprep.subr.mxu0 0.0
    %742 = vmatpush1.msra.mxu0 0.0
    %743 = vmatprep.subr.mxu0 0.0
    %744 = vmatpush1.msra.mxu0 0.0
    %745 = vmatprep.subr.mxu0 0.0
    %746 = vmatpush1.msra.mxu0 0.0
    %747 = vmatprep.subr.mxu0 0.0
    %748 = vmatpush1.msra.mxu0 0.0
    %749 = vmatprep.subr.mxu0 0.0
    %750 = vmatpush1.msra.mxu0 0.0
    %751 = vmatprep.subr.mxu0 0.0
    %752 = vmatpush1.msra.mxu0 0.0
    %753 = vmatprep.subr.mxu0 0.0
    %754 = vmatpush1.msra.mxu0 0.0
    %755 = vmatprep.subr.mxu0 0.0
    %756 = vmatpush1.msra.mxu0 0.0
    %757 = vmatprep.subr.mxu0 0.0
    %758 = vmatpush1.msra.mxu0 0.0
    %759 = vmatprep.subr.mxu0 0.0
    %760 = vmatpush1.msra.mxu0 0.0
    %761 = vmatprep.subr.mxu0 0.0
    %762 = vmatpush1.msra.mxu0 0.0
    %763 = vmatprep.subr.mxu0 0.0
    %764 = vmatpush1.msra.mxu0 0.0
    %765 = vmatprep.subr.mxu0 0.0
    %766 = vmatpush1.msra.mxu0 0.0
    %767 = vmatprep.subr.mxu0 0.0
    %768 = vmatpush1.msra.mxu0 0.0
    %769 = vmatprep.subr.mxu0 0.0
    %770 = vmatpush1.msra.mxu0 0.0
    %771 = vmatprep.mubr.f32.mxu0 0.0
    %772 = vmatmul.mubr.f32.gmra.mrb[0].mxu0 %v245
    %v773 = vpop.f32.mrb[0].mxu0
    %v774 = vadd.f32 %v702, %v773
    %v775 = vpop.f32.mrb[0].mxu0
    %776 = vdwg.mxu0
    %777 = vrot.lane.b32.xlu0 %v239, 64
    %v778 = vpop.permute.xlu0 %777
    %v781 = vsel %vm247, %v158, 0
    %783 = vmatprep.subr.mxu0 0.0
    %784 = vmatpush1.msra.mxu0 %v781
    %785 = vmatprep.subr.mxu0 0.0
    %786 = vmatpush1.msra.mxu0 0.0
    %787 = vmatprep.subr.mxu0 0.0
    %788 = vmatpush1.msra.mxu0 0.0
    %789 = vmatprep.subr.mxu0 0.0
    %790 = vmatpush1.msra.mxu0 0.0
    %791 = vmatprep.subr.mxu0 0.0
    %792 = vmatpush1.msra.mxu0 0.0
    %793 = vmatprep.subr.mxu0 0.0
    %794 = vmatpush1.msra.mxu0 0.0
    %795 = vmatprep.subr.mxu0 0.0
    %796 = vmatpush1.msra.mxu0 0.0
    %797 = vmatprep.subr.mxu0 0.0
    %798 = vmatpush1.msra.mxu0 0.0
    %799 = vmatprep.subr.mxu0 0.0
    %800 = vmatpush1.msra.mxu0 0.0
    %801 = vmatprep.subr.mxu0 0.0
    %802 = vmatpush1.msra.mxu0 0.0
    %803 = vmatprep.subr.mxu0 0.0
    %804 = vmatpush1.msra.mxu0 0.0
    %805 = vmatprep.subr.mxu0 0.0
    %806 = vmatpush1.msra.mxu0 0.0
    %807 = vmatprep.subr.mxu0 0.0
    %808 = vmatpush1.msra.mxu0 0.0
    %809 = vmatprep.subr.mxu0 0.0
    %810 = vmatpush1.msra.mxu0 0.0
    %811 = vmatprep.subr.mxu0 0.0
    %812 = vmatpush1.msra.mxu0 0.0
    %813 = vmatprep.subr.mxu0 0.0
    %814 = vmatpush1.msra.mxu0 0.0
    %815 = vmatprep.subr.mxu0 0.0
    %816 = vmatpush1.msra.mxu0 0.0
    %817 = vmatprep.subr.mxu0 0.0
    %818 = vmatpush1.msra.mxu0 0.0
    %819 = vmatprep.subr.mxu0 0.0
    %820 = vmatpush1.msra.mxu0 0.0
    %821 = vmatprep.subr.mxu0 0.0
    %822 = vmatpush1.msra.mxu0 0.0
    %823 = vmatprep.subr.mxu0 0.0
    %824 = vmatpush1.msra.mxu0 0.0
    %825 = vmatprep.subr.mxu0 0.0
    %826 = vmatpush1.msra.mxu0 0.0
    %827 = vmatprep.subr.mxu0 0.0
    %828 = vmatpush1.msra.mxu0 0.0
    %829 = vmatprep.subr.mxu0 0.0
    %830 = vmatpush1.msra.mxu0 0.0
    %831 = vmatprep.subr.mxu0 0.0
    %832 = vmatpush1.msra.mxu0 0.0
    %833 = vmatprep.subr.mxu0 0.0
    %834 = vmatpush1.msra.mxu0 0.0
    %835 = vmatprep.subr.mxu0 0.0
    %836 = vmatpush1.msra.mxu0 0.0
    %837 = vmatprep.subr.mxu0 0.0
    %838 = vmatpush1.msra.mxu0 0.0
    %839 = vmatprep.subr.mxu0 0.0
    %840 = vmatpush1.msra.mxu0 0.0
    %841 = vmatprep.subr.mxu0 0.0
    %842 = vmatpush1.msra.mxu0 0.0
    %843 = vmatprep.subr.mxu0 0.0
    %844 = vmatpush1.msra.mxu0 0.0
    %845 = vmatprep.subr.mxu0 0.0
    %846 = vmatpush1.msra.mxu0 0.0
    %847 = vmatprep.mubr.f32.mxu0 0.0
    %848 = vmatmul.mubr.f32.gmra.mrb[0].mxu0 %v245
    %v849 = vpop.f32.mrb[0].mxu0
    %v850 = vadd.f32 %v778, %v849
    %v851 = vpop.f32.mrb[0].mxu0
    %852 = vdwg.mxu0
    %v853 = vmax.f32 %v318, 0.0
    %v854 = vmax.f32 %v394, 0.0
    %v855 = vmax.f32 %v470, 0.0
    %v856 = vmax.f32 %v546, 0.0
    %v857 = vmax.f32 %v622, 0.0
    %v858 = vmax.f32 %v698, 0.0
    %v859 = vmax.f32 %v774, 0.0
    %v860 = vmax.f32 %v850, 0.0
    %862 = vrot.lane.b32.xlu0 %v74, 80
    %v863 = vpop.permute.xlu0 %862
    %864 = vrot.lane.b32.xlu0 %v74, 64
    %v865 = vpop.permute.xlu0 %864
    %866 = vrot.lane.b32.xlu0 %v74, 48
    %v867 = vpop.permute.xlu0 %866
    %868 = vrot.lane.b32.xlu0 %v74, 32
    %v869 = vpop.permute.xlu0 %868
    %870 = vrot.lane.b32.xlu0 %v74, 16
    %v871 = vpop.permute.xlu0 %870
    %872 = vrot.lane.b32.xlu0 %v74, 112
    %v873 = vpop.permute.xlu0 %872
    %874 = vrot.lane.b32.xlu0 %v74, 96
    %v875 = vpop.permute.xlu0 %874
    %877 = vrot.lane.b32.xlu0 %v75, 80
    %v878 = vpop.permute.xlu0 %877
    %879 = vrot.lane.b32.xlu0 %v75, 64
    %v880 = vpop.permute.xlu0 %879
    %881 = vrot.lane.b32.xlu0 %v75, 48
    %v882 = vpop.permute.xlu0 %881
    %883 = vrot.lane.b32.xlu0 %v75, 32
    %v884 = vpop.permute.xlu0 %883
    %885 = vrot.lane.b32.xlu0 %v75, 16
    %v886 = vpop.permute.xlu0 %885
    %887 = vrot.lane.b32.xlu0 %v73, 48
    %v888 = vpop.permute.xlu0 %887
    %889 = vrot.lane.b32.xlu0 %v83, 48
    %v890 = vpop.permute.xlu0 %889
    %891 = vrot.lane.b32.xlu0 %v86, 48
    %v892 = vpop.permute.xlu0 %891
    %893 = vrot.lane.b32.xlu0 %v863, 48
    %v894 = vpop.permute.xlu0 %893
    %895 = vrot.lane.b32.xlu0 %v865, 48
    %v896 = vpop.permute.xlu0 %895
    %897 = vrot.lane.b32.xlu0 %v867, 48
    %v898 = vpop.permute.xlu0 %897
    %899 = vrot.lane.b32.xlu0 %v869, 48
    %v900 = vpop.permute.xlu0 %899
    %901 = vrot.lane.b32.xlu0 %v871, 48
    %v902 = vpop.permute.xlu0 %901
    %903 = vrot.lane.b32.xlu0 %v873, 48
    %v904 = vpop.permute.xlu0 %903
    %905 = vrot.lane.b32.xlu0 %v875, 48
    %v906 = vpop.permute.xlu0 %905
    %907 = vrot.lane.b32.xlu0 %v878, 48
    %v908 = vpop.permute.xlu0 %907
    %909 = vrot.lane.b32.xlu0 %v880, 48
    %v910 = vpop.permute.xlu0 %909
    %911 = vrot.lane.b32.xlu0 %v882, 48
    %v912 = vpop.permute.xlu0 %911
    %913 = vrot.lane.b32.xlu0 %v884, 48
    %v914 = vpop.permute.xlu0 %913
    %915 = vrot.lane.b32.xlu0 %v886, 48
    %v916 = vpop.permute.xlu0 %915
    %v933 = vcombine.low %v888, %v892
    %v934 = vcombine.high %v888, %v892
    %v936 = vunpack.c.l.s4 1983009808
    %v937 = vunpack.c.0.s8 %v936
    %v938 = vlaneseq
    %v939 = vshrl.u32 %v938, 7
    %v940 = vsub.s32 %v937, %v939
    %v941 = vrot.slane %v933, %v940
    %v943 = vunpack.c.l.s4 1983009808
    %v944 = vunpack.c.0.s8 %v943
    %v945 = vlaneseq
    %v946 = vshrl.u32 %v945, 7
    %v947 = vsub.s32 %v944, %v946
    %v948 = vrot.slane %v934, %v947
    %v949 = vcombine.low %v890, %v894
    %v950 = vcombine.high %v890, %v894
    %v952 = vunpack.c.l.s4 1983009808
    %v953 = vunpack.c.0.s8 %v952
    %v954 = vlaneseq
    %v955 = vshrl.u32 %v954, 7
    %v956 = vsub.s32 %v953, %v955
    %v957 = vrot.slane %v949, %v956
    %v959 = vunpack.c.l.s4 1983009808
    %v960 = vunpack.c.0.s8 %v959
    %v961 = vlaneseq
    %v962 = vshrl.u32 %v961, 7
    %v963 = vsub.s32 %v960, %v962
    %v964 = vrot.slane %v950, %v963
    %v965 = vcombine.low %v896, %v900
    %v966 = vcombine.high %v896, %v900
    %v968 = vunpack.c.l.s4 1983009808
    %v969 = vunpack.c.0.s8 %v968
    %v970 = vlaneseq
    %v971 = vshrl.u32 %v970, 7
    %v972 = vsub.s32 %v969, %v971
    %v973 = vrot.slane %v965, %v972
    %v975 = vunpack.c.l.s4 1983009808
    %v976 = vunpack.c.0.s8 %v975
    %v977 = vlaneseq
    %v978 = vshrl.u32 %v977, 7
    %v979 = vsub.s32 %v976, %v978
    %v980 = vrot.slane %v966, %v979
    %v981 = vcombine.low %v898, %v902
    %v982 = vcombine.high %v898, %v902
    %v984 = vunpack.c.l.s4 1983009808
    %v985 = vunpack.c.0.s8 %v984
    %v986 = vlaneseq
    %v987 = vshrl.u32 %v986, 7
    %v988 = vsub.s32 %v985, %v987
    %v989 = vrot.slane %v981, %v988
    %v991 = vunpack.c.l.s4 1983009808
    %v992 = vunpack.c.0.s8 %v991
    %v993 = vlaneseq
    %v994 = vshrl.u32 %v993, 7
    %v995 = vsub.s32 %v992, %v994
    %v996 = vrot.slane %v982, %v995
    %v997 = vcombine.low %v941, %v957
    %v998 = vcombine.high %v941, %v957
    %v1000 = vunpack.c.l.s4 1934713408
    %v1001 = vunpack.c.0.s8 %v1000
    %v1002 = vlaneseq
    %v1003 = vshrl.u32 %v1002, 7
    %v1004 = vsub.s32 %v1001, %v1003
    %v1005 = vrot.slane %v997, %v1004
    %v1007 = vunpack.c.l.s4 1934713408
    %v1008 = vunpack.c.0.s8 %v1007
    %v1009 = vlaneseq
    %v1010 = vshrl.u32 %v1009, 7
    %v1011 = vsub.s32 %v1008, %v1010
    %v1012 = vrot.slane %v998, %v1011
    %v1013 = vcombine.low %v948, %v964
    %v1014 = vcombine.high %v948, %v964
    %v1016 = vunpack.c.l.s4 1934713408
    %v1017 = vunpack.c.0.s8 %v1016
    %v1018 = vlaneseq
    %v1019 = vshrl.u32 %v1018, 7
    %v1020 = vsub.s32 %v1017, %v1019
    %v1021 = vrot.slane %v1013, %v1020
    %v1023 = vunpack.c.l.s4 1934713408
    %v1024 = vunpack.c.0.s8 %v1023
    %v1025 = vlaneseq
    %v1026 = vshrl.u32 %v1025, 7
    %v1027 = vsub.s32 %v1024, %v1026
    %v1028 = vrot.slane %v1014, %v1027
    %v1029 = vcombine.low %v973, %v989
    %v1030 = vcombine.high %v973, %v989
    %v1032 = vunpack.c.l.s4 1934713408
    %v1033 = vunpack.c.0.s8 %v1032
    %v1034 = vlaneseq
    %v1035 = vshrl.u32 %v1034, 7
    %v1036 = vsub.s32 %v1033, %v1035
    %v1037 = vrot.slane %v1029, %v1036
    %v1039 = vunpack.c.l.s4 1934713408
    %v1040 = vunpack.c.0.s8 %v1039
    %v1041 = vlaneseq
    %v1042 = vshrl.u32 %v1041, 7
    %v1043 = vsub.s32 %v1040, %v1042
    %v1044 = vrot.slane %v1030, %v1043
    %v1045 = vcombine.low %v980, %v996
    %v1046 = vcombine.high %v980, %v996
    %v1048 = vunpack.c.l.s4 1934713408
    %v1049 = vunpack.c.0.s8 %v1048
    %v1050 = vlaneseq
    %v1051 = vshrl.u32 %v1050, 7
    %v1052 = vsub.s32 %v1049, %v1051
    %v1053 = vrot.slane %v1045, %v1052
    %v1055 = vunpack.c.l.s4 1934713408
    %v1056 = vunpack.c.0.s8 %v1055
    %v1057 = vlaneseq
    %v1058 = vshrl.u32 %v1057, 7
    %v1059 = vsub.s32 %v1056, %v1058
    %v1060 = vrot.slane %v1046, %v1059
    %v1061 = vcombine.low %v1005, %v1037
    %v1062 = vcombine.high %v1005, %v1037
    %v1063 = vcombine.low %v1012, %v1044
    %v1064 = vcombine.high %v1012, %v1044
    %v1065 = vcombine.low %v1021, %v1053
    %v1066 = vcombine.high %v1021, %v1053
    %v1067 = vcombine.low %v1028, %v1060
    %v1068 = vcombine.high %v1028, %v1060
    %v1069 = vcombine.low %v867, %v906
    %v1070 = vcombine.high %v867, %v906
    %v1072 = vunpack.c.l.s4 1983009808
    %v1073 = vunpack.c.0.s8 %v1072
    %v1074 = vlaneseq
    %v1075 = vshrl.u32 %v1074, 7
    %v1076 = vsub.s32 %v1073, %v1075
    %v1077 = vrot.slane %v1069, %v1076
    %v1079 = vunpack.c.l.s4 1983009808
    %v1080 = vunpack.c.0.s8 %v1079
    %v1081 = vlaneseq
    %v1082 = vshrl.u32 %v1081, 7
    %v1083 = vsub.s32 %v1080, %v1082
    %v1084 = vrot.slane %v1070, %v1083
    %v1085 = vcombine.low %v904, %v908
    %v1086 = vcombine.high %v904, %v908
    %v1088 = vunpack.c.l.s4 1983009808
    %v1089 = vunpack.c.0.s8 %v1088
    %v1090 = vlaneseq
    %v1091 = vshrl.u32 %v1090, 7
    %v1092 = vsub.s32 %v1089, %v1091
    %v1093 = vrot.slane %v1085, %v1092
    %v1095 = vunpack.c.l.s4 1983009808
    %v1096 = vunpack.c.0.s8 %v1095
    %v1097 = vlaneseq
    %v1098 = vshrl.u32 %v1097, 7
    %v1099 = vsub.s32 %v1096, %v1098
    %v1100 = vrot.slane %v1086, %v1099
    %v1101 = vcombine.low %v910, %v914
    %v1102 = vcombine.high %v910, %v914
    %v1104 = vunpack.c.l.s4 1983009808
    %v1105 = vunpack.c.0.s8 %v1104
    %v1106 = vlaneseq
    %v1107 = vshrl.u32 %v1106, 7
    %v1108 = vsub.s32 %v1105, %v1107
    %v1109 = vrot.slane %v1101, %v1108
    %v1111 = vunpack.c.l.s4 1983009808
    %v1112 = vunpack.c.0.s8 %v1111
    %v1113 = vlaneseq
    %v1114 = vshrl.u32 %v1113, 7
    %v1115 = vsub.s32 %v1112, %v1114
    %v1116 = vrot.slane %v1102, %v1115
    %v1117 = vcombine.low %v912, %v916
    %v1118 = vcombine.high %v912, %v916
    %v1120 = vunpack.c.l.s4 1983009808
    %v1121 = vunpack.c.0.s8 %v1120
    %v1122 = vlaneseq
    %v1123 = vshrl.u32 %v1122, 7
    %v1124 = vsub.s32 %v1121, %v1123
    %v1125 = vrot.slane %v1117, %v1124
    %v1127 = vunpack.c.l.s4 1983009808
    %v1128 = vunpack.c.0.s8 %v1127
    %v1129 = vlaneseq
    %v1130 = vshrl.u32 %v1129, 7
    %v1131 = vsub.s32 %v1128, %v1130
    %v1132 = vrot.slane %v1118, %v1131
    %v1133 = vcombine.low %v1077, %v1093
    %v1134 = vcombine.high %v1077, %v1093
    %v1136 = vunpack.c.l.s4 1934713408
    %v1137 = vunpack.c.0.s8 %v1136
    %v1138 = vlaneseq
    %v1139 = vshrl.u32 %v1138, 7
    %v1140 = vsub.s32 %v1137, %v1139
    %v1141 = vrot.slane %v1133, %v1140
    %v1143 = vunpack.c.l.s4 1934713408
    %v1144 = vunpack.c.0.s8 %v1143
    %v1145 = vlaneseq
    %v1146 = vshrl.u32 %v1145, 7
    %v1147 = vsub.s32 %v1144, %v1146
    %v1148 = vrot.slane %v1134, %v1147
    %v1149 = vcombine.low %v1084, %v1100
    %v1150 = vcombine.high %v1084, %v1100
    %v1152 = vunpack.c.l.s4 1934713408
    %v1153 = vunpack.c.0.s8 %v1152
    %v1154 = vlaneseq
    %v1155 = vshrl.u32 %v1154, 7
    %v1156 = vsub.s32 %v1153, %v1155
    %v1157 = vrot.slane %v1149, %v1156
    %v1159 = vunpack.c.l.s4 1934713408
    %v1160 = vunpack.c.0.s8 %v1159
    %v1161 = vlaneseq
    %v1162 = vshrl.u32 %v1161, 7
    %v1163 = vsub.s32 %v1160, %v1162
    %v1164 = vrot.slane %v1150, %v1163
    %v1165 = vcombine.low %v1109, %v1125
    %v1166 = vcombine.high %v1109, %v1125
    %v1168 = vunpack.c.l.s4 1934713408
    %v1169 = vunpack.c.0.s8 %v1168
    %v1170 = vlaneseq
    %v1171 = vshrl.u32 %v1170, 7
    %v1172 = vsub.s32 %v1169, %v1171
    %v1173 = vrot.slane %v1165, %v1172
    %v1175 = vunpack.c.l.s4 1934713408
    %v1176 = vunpack.c.0.s8 %v1175
    %v1177 = vlaneseq
    %v1178 = vshrl.u32 %v1177, 7
    %v1179 = vsub.s32 %v1176, %v1178
    %v1180 = vrot.slane %v1166, %v1179
    %v1181 = vcombine.low %v1116, %v1132
    %v1182 = vcombine.high %v1116, %v1132
    %v1184 = vunpack.c.l.s4 1934713408
    %v1185 = vunpack.c.0.s8 %v1184
    %v1186 = vlaneseq
    %v1187 = vshrl.u32 %v1186, 7
    %v1188 = vsub.s32 %v1185, %v1187
    %v1189 = vrot.slane %v1181, %v1188
    %v1191 = vunpack.c.l.s4 1934713408
    %v1192 = vunpack.c.0.s8 %v1191
    %v1193 = vlaneseq
    %v1194 = vshrl.u32 %v1193, 7
    %v1195 = vsub.s32 %v1192, %v1194
    %v1196 = vrot.slane %v1182, %v1195
    %v1197 = vcombine.low %v1141, %v1173
    %v1198 = vcombine.high %v1141, %v1173
    %v1199 = vcombine.low %v1148, %v1180
    %v1200 = vcombine.high %v1148, %v1180
    %v1201 = vcombine.low %v1157, %v1189
    %v1202 = vcombine.high %v1157, %v1189
    %v1203 = vcombine.low %v1164, %v1196
    %v1204 = vcombine.high %v1164, %v1196
    %v1205 = vcombine.high %v75, %v75
    %v1207 = vunpack.c.l.s4 1966171168
    %v1208 = vunpack.c.0.s8 %v1207
    %v1209 = vlaneseq
    %v1210 = vshrl.u32 %v1209, 7
    %v1211 = vsub.s32 %v1208, %v1210
    %v1212 = vrot.slane %v75, %v1211
    %v1214 = vunpack.c.l.s4 1966171168
    %v1215 = vunpack.c.0.s8 %v1214
    %v1216 = vlaneseq
    %v1217 = vshrl.u32 %v1216, 7
    %v1218 = vsub.s32 %v1215, %v1217
    %v1219 = vrot.slane %v1205, %v1218
    %v1220 = vcombine.high %v1212, %v1212
    %v1221 = vcombine.high %v1219, %v1219
    %v1223 = vunpack.c.l.s4 1966171168
    %v1224 = vunpack.c.0.s8 %v1223
    %v1225 = vlaneseq
    %v1226 = vshrl.u32 %v1225, 7
    %v1227 = vsub.s32 %v1224, %v1226
    %v1228 = vrot.slane %v1212, %v1227
    %v1230 = vunpack.c.l.s4 1966171168
    %v1231 = vunpack.c.0.s8 %v1230
    %v1232 = vlaneseq
    %v1233 = vshrl.u32 %v1232, 7
    %v1234 = vsub.s32 %v1231, %v1233
    %v1235 = vrot.slane %v1219, %v1234
    %v1237 = vunpack.c.l.s4 1966171168
    %v1238 = vunpack.c.0.s8 %v1237
    %v1239 = vlaneseq
    %v1240 = vshrl.u32 %v1239, 7
    %v1241 = vsub.s32 %v1238, %v1240
    %v1242 = vrot.slane %v1220, %v1241
    %v1244 = vunpack.c.l.s4 1966171168
    %v1245 = vunpack.c.0.s8 %v1244
    %v1246 = vlaneseq
    %v1247 = vshrl.u32 %v1246, 7
    %v1248 = vsub.s32 %v1245, %v1247
    %v1249 = vrot.slane %v1221, %v1248
    %v1250 = vcombine.high %v1228, %v1228
    %v1251 = vcombine.high %v1235, %v1235
    %v1252 = vcombine.high %v1242, %v1242
    %v1253 = vcombine.high %v1249, %v1249
    %v1254 = vlaneseq
    %v1255 = vshrl.u32 %v1254, 7
    %v1256 = vsub.s32 0, %v1255
    %v1257 = vrot.slane %v1228, %v1256
    %v1258 = vlaneseq
    %v1259 = vshrl.u32 %v1258, 7
    %v1260 = vsub.s32 0, %v1259
    %v1261 = vrot.slane %v1242, %v1260
    %v1262 = vlaneseq
    %v1263 = vshrl.u32 %v1262, 7
    %v1264 = vsub.s32 0, %v1263
    %v1265 = vrot.slane %v1250, %v1264
    %v1266 = vlaneseq
    %v1267 = vshrl.u32 %v1266, 7
    %v1268 = vsub.s32 0, %v1267
    %v1269 = vrot.slane %v1252, %v1268
    %v1270 = vlaneseq
    %v1271 = vshrl.u32 %v1270, 7
    %v1272 = vsub.s32 0, %v1271
    %v1273 = vrot.slane %v1235, %v1272
    %v1274 = vlaneseq
    %v1275 = vshrl.u32 %v1274, 7
    %v1276 = vsub.s32 0, %v1275
    %v1277 = vrot.slane %v1249, %v1276
    %v1278 = vlaneseq
    %v1279 = vshrl.u32 %v1278, 7
    %v1280 = vsub.s32 0, %v1279
    %v1281 = vrot.slane %v1251, %v1280
    %v1282 = vlaneseq
    %v1283 = vshrl.u32 %v1282, 7
    %v1284 = vsub.s32 0, %v1283
    %v1285 = vrot.slane %v1253, %v1284
    %1286 = vrot.lane.b32.xlu0 %v1257, 48
    %v1287 = vpop.permute.xlu0 %1286
    %vm1289 = vcmask 130048
    %v1291 = vsel %vm1289, %v853, 0
    %1293 = vmatprep.subr.mxu0 0.0
    %1294 = vmatpush1.msra.mxu0 %v1061
    %1295 = vmatprep.subr.mxu0 0.0
    %1296 = vmatpush1.msra.mxu0 %v1197
    %1297 = vmatprep.subr.mxu0 0.0
    %1298 = vmatpush1.msra.mxu0 0.0
    %1299 = vmatprep.subr.mxu0 0.0
    %1300 = vmatpush1.msra.mxu0 0.0
    %1301 = vmatprep.subr.mxu0 0.0
    %1302 = vmatpush1.msra.mxu0 0.0
    %1303 = vmatprep.subr.mxu0 0.0
    %1304 = vmatpush1.msra.mxu0 0.0
    %1305 = vmatprep.subr.mxu0 0.0
    %1306 = vmatpush1.msra.mxu0 0.0
    %1307 = vmatprep.subr.mxu0 0.0
    %1308 = vmatpush1.msra.mxu0 0.0
    %1309 = vmatprep.subr.mxu0 0.0
    %1310 = vmatpush1.msra.mxu0 0.0
    %1311 = vmatprep.subr.mxu0 0.0
    %1312 = vmatpush1.msra.mxu0 0.0
    %1313 = vmatprep.subr.mxu0 0.0
    %1314 = vmatpush1.msra.mxu0 0.0
    %1315 = vmatprep.subr.mxu0 0.0
    %1316 = vmatpush1.msra.mxu0 0.0
    %1317 = vmatprep.subr.mxu0 0.0
    %1318 = vmatpush1.msra.mxu0 0.0
    %1319 = vmatprep.subr.mxu0 0.0
    %1320 = vmatpush1.msra.mxu0 0.0
    %1321 = vmatprep.subr.mxu0 0.0
    %1322 = vmatpush1.msra.mxu0 0.0
    %1323 = vmatprep.subr.mxu0 0.0
    %1324 = vmatpush1.msra.mxu0 0.0
    %1325 = vmatprep.subr.mxu0 0.0
    %1326 = vmatpush1.msra.mxu0 0.0
    %1327 = vmatprep.subr.mxu0 0.0
    %1328 = vmatpush1.msra.mxu0 0.0
    %1329 = vmatprep.subr.mxu0 0.0
    %1330 = vmatpush1.msra.mxu0 0.0
    %1331 = vmatprep.subr.mxu0 0.0
    %1332 = vmatpush1.msra.mxu0 0.0
    %1333 = vmatprep.subr.mxu0 0.0
    %1334 = vmatpush1.msra.mxu0 0.0
    %1335 = vmatprep.subr.mxu0 0.0
    %1336 = vmatpush1.msra.mxu0 0.0
    %1337 = vmatprep.subr.mxu0 0.0
    %1338 = vmatpush1.msra.mxu0 0.0
    %1339 = vmatprep.subr.mxu0 0.0
    %1340 = vmatpush1.msra.mxu0 0.0
    %1341 = vmatprep.subr.mxu0 0.0
    %1342 = vmatpush1.msra.mxu0 0.0
    %1343 = vmatprep.subr.mxu0 0.0
    %1344 = vmatpush1.msra.mxu0 0.0
    %1345 = vmatprep.subr.mxu0 0.0
    %1346 = vmatpush1.msra.mxu0 0.0
    %1347 = vmatprep.subr.mxu0 0.0
    %1348 = vmatpush1.msra.mxu0 0.0
    %1349 = vmatprep.subr.mxu0 0.0
    %1350 = vmatpush1.msra.mxu0 0.0
    %1351 = vmatprep.subr.mxu0 0.0
    %1352 = vmatpush1.msra.mxu0 0.0
    %1353 = vmatprep.subr.mxu0 0.0
    %1354 = vmatpush1.msra.mxu0 0.0
    %1355 = vmatprep.subr.mxu0 0.0
    %1356 = vmatpush1.msra.mxu0 0.0
    %1357 = vmatprep.mubr.f32.mxu0 0.0
    %1358 = vmatmul.mubr.f32.gmra.mrb[0].mxu0 %v1291
    %v1359 = vpop.f32.mrb[0].mxu0
    %v1360 = vadd.f32 %v1287, %v1359
    %v1361 = vpop.f32.mrb[0].mxu0
    %1362 = vdwg.mxu0
    %1363 = vrot.lane.b32.xlu0 %v1261, 48
    %v1364 = vpop.permute.xlu0 %1363
    %v1367 = vsel %vm1289, %v854, 0
    %1369 = vmatprep.subr.mxu0 0.0
    %1370 = vmatpush1.msra.mxu0 %v1062
    %1371 = vmatprep.subr.mxu0 0.0
    %1372 = vmatpush1.msra.mxu0 %v1198
    %1373 = vmatprep.subr.mxu0 0.0
    %1374 = vmatpush1.msra.mxu0 0.0
    %1375 = vmatprep.subr.mxu0 0.0
    %1376 = vmatpush1.msra.mxu0 0.0
    %1377 = vmatprep.subr.mxu0 0.0
    %1378 = vmatpush1.msra.mxu0 0.0
    %1379 = vmatprep.subr.mxu0 0.0
    %1380 = vmatpush1.msra.mxu0 0.0
    %1381 = vmatprep.subr.mxu0 0.0
    %1382 = vmatpush1.msra.mxu0 0.0
    %1383 = vmatprep.subr.mxu0 0.0
    %1384 = vmatpush1.msra.mxu0 0.0
    %1385 = vmatprep.subr.mxu0 0.0
    %1386 = vmatpush1.msra.mxu0 0.0
    %1387 = vmatprep.subr.mxu0 0.0
    %1388 = vmatpush1.msra.mxu0 0.0
    %1389 = vmatprep.subr.mxu0 0.0
    %1390 = vmatpush1.msra.mxu0 0.0
    %1391 = vmatprep.subr.mxu0 0.0
    %1392 = vmatpush1.msra.mxu0 0.0
    %1393 = vmatprep.subr.mxu0 0.0
    %1394 = vmatpush1.msra.mxu0 0.0
    %1395 = vmatprep.subr.mxu0 0.0
    %1396 = vmatpush1.msra.mxu0 0.0
    %1397 = vmatprep.subr.mxu0 0.0
    %1398 = vmatpush1.msra.mxu0 0.0
    %1399 = vmatprep.subr.mxu0 0.0
    %1400 = vmatpush1.msra.mxu0 0.0
    %1401 = vmatprep.subr.mxu0 0.0
    %1402 = vmatpush1.msra.mxu0 0.0
    %1403 = vmatprep.subr.mxu0 0.0
    %1404 = vmatpush1.msra.mxu0 0.0
    %1405 = vmatprep.subr.mxu0 0.0
    %1406 = vmatpush1.msra.mxu0 0.0
    %1407 = vmatprep.subr.mxu0 0.0
    %1408 = vmatpush1.msra.mxu0 0.0
    %1409 = vmatprep.subr.mxu0 0.0
    %1410 = vmatpush1.msra.mxu0 0.0
    %1411 = vmatprep.subr.mxu0 0.0
    %1412 = vmatpush1.msra.mxu0 0.0
    %1413 = vmatprep.subr.mxu0 0.0
    %1414 = vmatpush1.msra.mxu0 0.0
    %1415 = vmatprep.subr.mxu0 0.0
    %1416 = vmatpush1.msra.mxu0 0.0
    %1417 = vmatprep.subr.mxu0 0.0
    %1418 = vmatpush1.msra.mxu0 0.0
    %1419 = vmatprep.subr.mxu0 0.0
    %1420 = vmatpush1.msra.mxu0 0.0
    %1421 = vmatprep.subr.mxu0 0.0
    %1422 = vmatpush1.msra.mxu0 0.0
    %1423 = vmatprep.subr.mxu0 0.0
    %1424 = vmatpush1.msra.mxu0 0.0
    %1425 = vmatprep.subr.mxu0 0.0
    %1426 = vmatpush1.msra.mxu0 0.0
    %1427 = vmatprep.subr.mxu0 0.0
    %1428 = vmatpush1.msra.mxu0 0.0
    %1429 = vmatprep.subr.mxu0 0.0
    %1430 = vmatpush1.msra.mxu0 0.0
    %1431 = vmatprep.subr.mxu0 0.0
    %1432 = vmatpush1.msra.mxu0 0.0
    %1433 = vmatprep.mubr.f32.mxu0 0.0
    %1434 = vmatmul.mubr.f32.gmra.mrb[0].mxu0 %v1367
    %v1435 = vpop.f32.mrb[0].mxu0
    %v1436 = vadd.f32 %v1364, %v1435
    %v1437 = vpop.f32.mrb[0].mxu0
    %1438 = vdwg.mxu0
    %1439 = vrot.lane.b32.xlu0 %v1265, 48
    %v1440 = vpop.permute.xlu0 %1439
    %v1443 = vsel %vm1289, %v855, 0
    %1445 = vmatprep.subr.mxu0 0.0
    %1446 = vmatpush1.msra.mxu0 %v1063
    %1447 = vmatprep.subr.mxu0 0.0
    %1448 = vmatpush1.msra.mxu0 %v1199
    %1449 = vmatprep.subr.mxu0 0.0
    %1450 = vmatpush1.msra.mxu0 0.0
    %1451 = vmatprep.subr.mxu0 0.0
    %1452 = vmatpush1.msra.mxu0 0.0
    %1453 = vmatprep.subr.mxu0 0.0
    %1454 = vmatpush1.msra.mxu0 0.0
    %1455 = vmatprep.subr.mxu0 0.0
    %1456 = vmatpush1.msra.mxu0 0.0
    %1457 = vmatprep.subr.mxu0 0.0
    %1458 = vmatpush1.msra.mxu0 0.0
    %1459 = vmatprep.subr.mxu0 0.0
    %1460 = vmatpush1.msra.mxu0 0.0
    %1461 = vmatprep.subr.mxu0 0.0
    %1462 = vmatpush1.msra.mxu0 0.0
    %1463 = vmatprep.subr.mxu0 0.0
    %1464 = vmatpush1.msra.mxu0 0.0
    %1465 = vmatprep.subr.mxu0 0.0
    %1466 = vmatpush1.msra.mxu0 0.0
    %1467 = vmatprep.subr.mxu0 0.0
    %1468 = vmatpush1.msra.mxu0 0.0
    %1469 = vmatprep.subr.mxu0 0.0
    %1470 = vmatpush1.msra.mxu0 0.0
    %1471 = vmatprep.subr.mxu0 0.0
    %1472 = vmatpush1.msra.mxu0 0.0
    %1473 = vmatprep.subr.mxu0 0.0
    %1474 = vmatpush1.msra.mxu0 0.0
    %1475 = vmatprep.subr.mxu0 0.0
    %1476 = vmatpush1.msra.mxu0 0.0
    %1477 = vmatprep.subr.mxu0 0.0
    %1478 = vmatpush1.msra.mxu0 0.0
    %1479 = vmatprep.subr.mxu0 0.0
    %1480 = vmatpush1.msra.mxu0 0.0
    %1481 = vmatprep.subr.mxu0 0.0
    %1482 = vmatpush1.msra.mxu0 0.0
    %1483 = vmatprep.subr.mxu0 0.0
    %1484 = vmatpush1.msra.mxu0 0.0
    %1485 = vmatprep.subr.mxu0 0.0
    %1486 = vmatpush1.msra.mxu0 0.0
    %1487 = vmatprep.subr.mxu0 0.0
    %1488 = vmatpush1.msra.mxu0 0.0
    %1489 = vmatprep.subr.mxu0 0.0
    %1490 = vmatpush1.msra.mxu0 0.0
    %1491 = vmatprep.subr.mxu0 0.0
    %1492 = vmatpush1.msra.mxu0 0.0
    %1493 = vmatprep.subr.mxu0 0.0
    %1494 = vmatpush1.msra.mxu0 0.0
    %1495 = vmatprep.subr.mxu0 0.0
    %1496 = vmatpush1.msra.mxu0 0.0
    %1497 = vmatprep.subr.mxu0 0.0
    %1498 = vmatpush1.msra.mxu0 0.0
    %1499 = vmatprep.subr.mxu0 0.0
    %1500 = vmatpush1.msra.mxu0 0.0
    %1501 = vmatprep.subr.mxu0 0.0
    %1502 = vmatpush1.msra.mxu0 0.0
    %1503 = vmatprep.subr.mxu0 0.0
    %1504 = vmatpush1.msra.mxu0 0.0
    %1505 = vmatprep.subr.mxu0 0.0
    %1506 = vmatpush1.msra.mxu0 0.0
    %1507 = vmatprep.subr.mxu0 0.0
    %1508 = vmatpush1.msra.mxu0 0.0
    %1509 = vmatprep.mubr.f32.mxu0 0.0
    %1510 = vmatmul.mubr.f32.gmra.mrb[0].mxu0 %v1443
    %v1511 = vpop.f32.mrb[0].mxu0
    %v1512 = vadd.f32 %v1440, %v1511
    %v1513 = vpop.f32.mrb[0].mxu0
    %1514 = vdwg.mxu0
    %1515 = vrot.lane.b32.xlu0 %v1269, 48
    %v1516 = vpop.permute.xlu0 %1515
    %v1519 = vsel %vm1289, %v856, 0
    %1521 = vmatprep.subr.mxu0 0.0
    %1522 = vmatpush1.msra.mxu0 %v1064
    %1523 = vmatprep.subr.mxu0 0.0
    %1524 = vmatpush1.msra.mxu0 %v1200
    %1525 = vmatprep.subr.mxu0 0.0
    %1526 = vmatpush1.msra.mxu0 0.0
    %1527 = vmatprep.subr.mxu0 0.0
    %1528 = vmatpush1.msra.mxu0 0.0
    %1529 = vmatprep.subr.mxu0 0.0
    %1530 = vmatpush1.msra.mxu0 0.0
    %1531 = vmatprep.subr.mxu0 0.0
    %1532 = vmatpush1.msra.mxu0 0.0
    %1533 = vmatprep.subr.mxu0 0.0
    %1534 = vmatpush1.msra.mxu0 0.0
    %1535 = vmatprep.subr.mxu0 0.0
    %1536 = vmatpush1.msra.mxu0 0.0
    %1537 = vmatprep.subr.mxu0 0.0
    %1538 = vmatpush1.msra.mxu0 0.0
    %1539 = vmatprep.subr.mxu0 0.0
    %1540 = vmatpush1.msra.mxu0 0.0
    %1541 = vmatprep.subr.mxu0 0.0
    %1542 = vmatpush1.msra.mxu0 0.0
    %1543 = vmatprep.subr.mxu0 0.0
    %1544 = vmatpush1.msra.mxu0 0.0
    %1545 = vmatprep.subr.mxu0 0.0
    %1546 = vmatpush1.msra.mxu0 0.0
    %1547 = vmatprep.subr.mxu0 0.0
    %1548 = vmatpush1.msra.mxu0 0.0
    %1549 = vmatprep.subr.mxu0 0.0
    %1550 = vmatpush1.msra.mxu0 0.0
    %1551 = vmatprep.subr.mxu0 0.0
    %1552 = vmatpush1.msra.mxu0 0.0
    %1553 = vmatprep.subr.mxu0 0.0
    %1554 = vmatpush1.msra.mxu0 0.0
    %1555 = vmatprep.subr.mxu0 0.0
    %1556 = vmatpush1.msra.mxu0 0.0
    %1557 = vmatprep.subr.mxu0 0.0
    %1558 = vmatpush1.msra.mxu0 0.0
    %1559 = vmatprep.subr.mxu0 0.0
    %1560 = vmatpush1.msra.mxu0 0.0
    %1561 = vmatprep.subr.mxu0 0.0
    %1562 = vmatpush1.msra.mxu0 0.0
    %1563 = vmatprep.subr.mxu0 0.0
    %1564 = vmatpush1.msra.mxu0 0.0
    %1565 = vmatprep.subr.mxu0 0.0
    %1566 = vmatpush1.msra.mxu0 0.0
    %1567 = vmatprep.subr.mxu0 0.0
    %1568 = vmatpush1.msra.mxu0 0.0
    %1569 = vmatprep.subr.mxu0 0.0
    %1570 = vmatpush1.msra.mxu0 0.0
    %1571 = vmatprep.subr.mxu0 0.0
    %1572 = vmatpush1.msra.mxu0 0.0
    %1573 = vmatprep.subr.mxu0 0.0
    %1574 = vmatpush1.msra.mxu0 0.0
    %1575 = vmatprep.subr.mxu0 0.0
    %1576 = vmatpush1.msra.mxu0 0.0
    %1577 = vmatprep.subr.mxu0 0.0
    %1578 = vmatpush1.msra.mxu0 0.0
    %1579 = vmatprep.subr.mxu0 0.0
    %1580 = vmatpush1.msra.mxu0 0.0
    %1581 = vmatprep.subr.mxu0 0.0
    %1582 = vmatpush1.msra.mxu0 0.0
    %1583 = vmatprep.subr.mxu0 0.0
    %1584 = vmatpush1.msra.mxu0 0.0
    %1585 = vmatprep.mubr.f32.mxu0 0.0
    %1586 = vmatmul.mubr.f32.gmra.mrb[0].mxu0 %v1519
    %v1587 = vpop.f32.mrb[0].mxu0
    %v1588 = vadd.f32 %v1516, %v1587
    %v1589 = vpop.f32.mrb[0].mxu0
    %1590 = vdwg.mxu0
    %1591 = vrot.lane.b32.xlu0 %v1273, 48
    %v1592 = vpop.permute.xlu0 %1591
    %v1595 = vsel %vm1289, %v857, 0
    %1597 = vmatprep.subr.mxu0 0.0
    %1598 = vmatpush1.msra.mxu0 %v1065
    %1599 = vmatprep.subr.mxu0 0.0
    %1600 = vmatpush1.msra.mxu0 %v1201
    %1601 = vmatprep.subr.mxu0 0.0
    %1602 = vmatpush1.msra.mxu0 0.0
    %1603 = vmatprep.subr.mxu0 0.0
    %1604 = vmatpush1.msra.mxu0 0.0
    %1605 = vmatprep.subr.mxu0 0.0
    %1606 = vmatpush1.msra.mxu0 0.0
    %1607 = vmatprep.subr.mxu0 0.0
    %1608 = vmatpush1.msra.mxu0 0.0
    %1609 = vmatprep.subr.mxu0 0.0
    %1610 = vmatpush1.msra.mxu0 0.0
    %1611 = vmatprep.subr.mxu0 0.0
    %1612 = vmatpush1.msra.mxu0 0.0
    %1613 = vmatprep.subr.mxu0 0.0
    %1614 = vmatpush1.msra.mxu0 0.0
    %1615 = vmatprep.subr.mxu0 0.0
    %1616 = vmatpush1.msra.mxu0 0.0
    %1617 = vmatprep.subr.mxu0 0.0
    %1618 = vmatpush1.msra.mxu0 0.0
    %1619 = vmatprep.subr.mxu0 0.0
    %1620 = vmatpush1.msra.mxu0 0.0
    %1621 = vmatprep.subr.mxu0 0.0
    %1622 = vmatpush1.msra.mxu0 0.0
    %1623 = vmatprep.subr.mxu0 0.0
    %1624 = vmatpush1.msra.mxu0 0.0
    %1625 = vmatprep.subr.mxu0 0.0
    %1626 = vmatpush1.msra.mxu0 0.0
    %1627 = vmatprep.subr.mxu0 0.0
    %1628 = vmatpush1.msra.mxu0 0.0
    %1629 = vmatprep.subr.mxu0 0.0
    %1630 = vmatpush1.msra.mxu0 0.0
    %1631 = vmatprep.subr.mxu0 0.0
    %1632 = vmatpush1.msra.mxu0 0.0
    %1633 = vmatprep.subr.mxu0 0.0
    %1634 = vmatpush1.msra.mxu0 0.0
    %1635 = vmatprep.subr.mxu0 0.0
    %1636 = vmatpush1.msra.mxu0 0.0
    %1637 = vmatprep.subr.mxu0 0.0
    %1638 = vmatpush1.msra.mxu0 0.0
    %1639 = vmatprep.subr.mxu0 0.0
    %1640 = vmatpush1.msra.mxu0 0.0
    %1641 = vmatprep.subr.mxu0 0.0
    %1642 = vmatpush1.msra.mxu0 0.0
    %1643 = vmatprep.subr.mxu0 0.0
    %1644 = vmatpush1.msra.mxu0 0.0
    %1645 = vmatprep.subr.mxu0 0.0
    %1646 = vmatpush1.msra.mxu0 0.0
    %1647 = vmatprep.subr.mxu0 0.0
    %1648 = vmatpush1.msra.mxu0 0.0
    %1649 = vmatprep.subr.mxu0 0.0
    %1650 = vmatpush1.msra.mxu0 0.0
    %1651 = vmatprep.subr.mxu0 0.0
    %1652 = vmatpush1.msra.mxu0 0.0
    %1653 = vmatprep.subr.mxu0 0.0
    %1654 = vmatpush1.msra.mxu0 0.0
    %1655 = vmatprep.subr.mxu0 0.0
    %1656 = vmatpush1.msra.mxu0 0.0
    %1657 = vmatprep.subr.mxu0 0.0
    %1658 = vmatpush1.msra.mxu0 0.0
    %1659 = vmatprep.subr.mxu0 0.0
    %1660 = vmatpush1.msra.mxu0 0.0
    %1661 = vmatprep.mubr.f32.mxu0 0.0
    %1662 = vmatmul.mubr.f32.gmra.mrb[0].mxu0 %v1595
    %v1663 = vpop.f32.mrb[0].mxu0
    %v1664 = vadd.f32 %v1592, %v1663
    %v1665 = vpop.f32.mrb[0].mxu0
    %1666 = vdwg.mxu0
    %1667 = vrot.lane.b32.xlu0 %v1277, 48
    %v1668 = vpop.permute.xlu0 %1667
    %v1671 = vsel %vm1289, %v858, 0
    %1673 = vmatprep.subr.mxu0 0.0
    %1674 = vmatpush1.msra.mxu0 %v1066
    %1675 = vmatprep.subr.mxu0 0.0
    %1676 = vmatpush1.msra.mxu0 %v1202
    %1677 = vmatprep.subr.mxu0 0.0
    %1678 = vmatpush1.msra.mxu0 0.0
    %1679 = vmatprep.subr.mxu0 0.0
    %1680 = vmatpush1.msra.mxu0 0.0
    %1681 = vmatprep.subr.mxu0 0.0
    %1682 = vmatpush1.msra.mxu0 0.0
    %1683 = vmatprep.subr.mxu0 0.0
    %1684 = vmatpush1.msra.mxu0 0.0
    %1685 = vmatprep.subr.mxu0 0.0
    %1686 = vmatpush1.msra.mxu0 0.0
    %1687 = vmatprep.subr.mxu0 0.0
    %1688 = vmatpush1.msra.mxu0 0.0
    %1689 = vmatprep.subr.mxu0 0.0
    %1690 = vmatpush1.msra.mxu0 0.0
    %1691 = vmatprep.subr.mxu0 0.0
    %1692 = vmatpush1.msra.mxu0 0.0
    %1693 = vmatprep.subr.mxu0 0.0
    %1694 = vmatpush1.msra.mxu0 0.0
    %1695 = vmatprep.subr.mxu0 0.0
    %1696 = vmatpush1.msra.mxu0 0.0
    %1697 = vmatprep.subr.mxu0 0.0
    %1698 = vmatpush1.msra.mxu0 0.0
    %1699 = vmatprep.subr.mxu0 0.0
    %1700 = vmatpush1.msra.mxu0 0.0
    %1701 = vmatprep.subr.mxu0 0.0
    %1702 = vmatpush1.msra.mxu0 0.0
    %1703 = vmatprep.subr.mxu0 0.0
    %1704 = vmatpush1.msra.mxu0 0.0
    %1705 = vmatprep.subr.mxu0 0.0
    %1706 = vmatpush1.msra.mxu0 0.0
    %1707 = vmatprep.subr.mxu0 0.0
    %1708 = vmatpush1.msra.mxu0 0.0
    %1709 = vmatprep.subr.mxu0 0.0
    %1710 = vmatpush1.msra.mxu0 0.0
    %1711 = vmatprep.subr.mxu0 0.0
    %1712 = vmatpush1.msra.mxu0 0.0
    %1713 = vmatprep.subr.mxu0 0.0
    %1714 = vmatpush1.msra.mxu0 0.0
    %1715 = vmatprep.subr.mxu0 0.0
    %1716 = vmatpush1.msra.mxu0 0.0
    %1717 = vmatprep.subr.mxu0 0.0
    %1718 = vmatpush1.msra.mxu0 0.0
    %1719 = vmatprep.subr.mxu0 0.0
    %1720 = vmatpush1.msra.mxu0 0.0
    %1721 = vmatprep.subr.mxu0 0.0
    %1722 = vmatpush1.msra.mxu0 0.0
    %1723 = vmatprep.subr.mxu0 0.0
    %1724 = vmatpush1.msra.mxu0 0.0
    %1725 = vmatprep.subr.mxu0 0.0
    %1726 = vmatpush1.msra.mxu0 0.0
    %1727 = vmatprep.subr.mxu0 0.0
    %1728 = vmatpush1.msra.mxu0 0.0
    %1729 = vmatprep.subr.mxu0 0.0
    %1730 = vmatpush1.msra.mxu0 0.0
    %1731 = vmatprep.subr.mxu0 0.0
    %1732 = vmatpush1.msra.mxu0 0.0
    %1733 = vmatprep.subr.mxu0 0.0
    %1734 = vmatpush1.msra.mxu0 0.0
    %1735 = vmatprep.subr.mxu0 0.0
    %1736 = vmatpush1.msra.mxu0 0.0
    %1737 = vmatprep.mubr.f32.mxu0 0.0
    %1738 = vmatmul.mubr.f32.gmra.mrb[0].mxu0 %v1671
    %v1739 = vpop.f32.mrb[0].mxu0
    %v1740 = vadd.f32 %v1668, %v1739
    %v1741 = vpop.f32.mrb[0].mxu0
    %1742 = vdwg.mxu0
    %1743 = vrot.lane.b32.xlu0 %v1281, 48
    %v1744 = vpop.permute.xlu0 %1743
    %v1747 = vsel %vm1289, %v859, 0
    %1749 = vmatprep.subr.mxu0 0.0
    %1750 = vmatpush1.msra.mxu0 %v1067
    %1751 = vmatprep.subr.mxu0 0.0
    %1752 = vmatpush1.msra.mxu0 %v1203
    %1753 = vmatprep.subr.mxu0 0.0
    %1754 = vmatpush1.msra.mxu0 0.0
    %1755 = vmatprep.subr.mxu0 0.0
    %1756 = vmatpush1.msra.mxu0 0.0
    %1757 = vmatprep.subr.mxu0 0.0
    %1758 = vmatpush1.msra.mxu0 0.0
    %1759 = vmatprep.subr.mxu0 0.0
    %1760 = vmatpush1.msra.mxu0 0.0
    %1761 = vmatprep.subr.mxu0 0.0
    %1762 = vmatpush1.msra.mxu0 0.0
    %1763 = vmatprep.subr.mxu0 0.0
    %1764 = vmatpush1.msra.mxu0 0.0
    %1765 = vmatprep.subr.mxu0 0.0
    %1766 = vmatpush1.msra.mxu0 0.0
    %1767 = vmatprep.subr.mxu0 0.0
    %1768 = vmatpush1.msra.mxu0 0.0
    %1769 = vmatprep.subr.mxu0 0.0
    %1770 = vmatpush1.msra.mxu0 0.0
    %1771 = vmatprep.subr.mxu0 0.0
    %1772 = vmatpush1.msra.mxu0 0.0
    %1773 = vmatprep.subr.mxu0 0.0
    %1774 = vmatpush1.msra.mxu0 0.0
    %1775 = vmatprep.subr.mxu0 0.0
    %1776 = vmatpush1.msra.mxu0 0.0
    %1777 = vmatprep.subr.mxu0 0.0
    %1778 = vmatpush1.msra.mxu0 0.0
    %1779 = vmatprep.subr.mxu0 0.0
    %1780 = vmatpush1.msra.mxu0 0.0
    %1781 = vmatprep.subr.mxu0 0.0
    %1782 = vmatpush1.msra.mxu0 0.0
    %1783 = vmatprep.subr.mxu0 0.0
    %1784 = vmatpush1.msra.mxu0 0.0
    %1785 = vmatprep.subr.mxu0 0.0
    %1786 = vmatpush1.msra.mxu0 0.0
    %1787 = vmatprep.subr.mxu0 0.0
    %1788 = vmatpush1.msra.mxu0 0.0
    %1789 = vmatprep.subr.mxu0 0.0
    %1790 = vmatpush1.msra.mxu0 0.0
    %1791 = vmatprep.subr.mxu0 0.0
    %1792 = vmatpush1.msra.mxu0 0.0
    %1793 = vmatprep.subr.mxu0 0.0
    %1794 = vmatpush1.msra.mxu0 0.0
    %1795 = vmatprep.subr.mxu0 0.0
    %1796 = vmatpush1.msra.mxu0 0.0
    %1797 = vmatprep.subr.mxu0 0.0
    %1798 = vmatpush1.msra.mxu0 0.0
    %1799 = vmatprep.subr.mxu0 0.0
    %1800 = vmatpush1.msra.mxu0 0.0
    %1801 = vmatprep.subr.mxu0 0.0
    %1802 = vmatpush1.msra.mxu0 0.0
    %1803 = vmatprep.subr.mxu0 0.0
    %1804 = vmatpush1.msra.mxu0 0.0
    %1805 = vmatprep.subr.mxu0 0.0
    %1806 = vmatpush1.msra.mxu0 0.0
    %1807 = vmatprep.subr.mxu0 0.0
    %1808 = vmatpush1.msra.mxu0 0.0
    %1809 = vmatprep.subr.mxu0 0.0
    %1810 = vmatpush1.msra.mxu0 0.0
    %1811 = vmatprep.subr.mxu0 0.0
    %1812 = vmatpush1.msra.mxu0 0.0
    %1813 = vmatprep.mubr.f32.mxu0 0.0
    %1814 = vmatmul.mubr.f32.gmra.mrb[0].mxu0 %v1747
    %v1815 = vpop.f32.mrb[0].mxu0
    %v1816 = vadd.f32 %v1744, %v1815
    %v1817 = vpop.f32.mrb[0].mxu0
    %1818 = vdwg.mxu0
    %1819 = vrot.lane.b32.xlu0 %v1285, 48
    %v1820 = vpop.permute.xlu0 %1819
    %v1823 = vsel %vm1289, %v860, 0
    %1825 = vmatprep.subr.mxu0 0.0
    %1826 = vmatpush1.msra.mxu0 %v1068
    %1827 = vmatprep.subr.mxu0 0.0
    %1828 = vmatpush1.msra.mxu0 %v1204
    %1829 = vmatprep.subr.mxu0 0.0
    %1830 = vmatpush1.msra.mxu0 0.0
    %1831 = vmatprep.subr.mxu0 0.0
    %1832 = vmatpush1.msra.mxu0 0.0
    %1833 = vmatprep.subr.mxu0 0.0
    %1834 = vmatpush1.msra.mxu0 0.0
    %1835 = vmatprep.subr.mxu0 0.0
    %1836 = vmatpush1.msra.mxu0 0.0
    %1837 = vmatprep.subr.mxu0 0.0
    %1838 = vmatpush1.msra.mxu0 0.0
    %1839 = vmatprep.subr.mxu0 0.0
    %1840 = vmatpush1.msra.mxu0 0.0
    %1841 = vmatprep.subr.mxu0 0.0
    %1842 = vmatpush1.msra.mxu0 0.0
    %1843 = vmatprep.subr.mxu0 0.0
    %1844 = vmatpush1.msra.mxu0 0.0
    %1845 = vmatprep.subr.mxu0 0.0
    %1846 = vmatpush1.msra.mxu0 0.0
    %1847 = vmatprep.subr.mxu0 0.0
    %1848 = vmatpush1.msra.mxu0 0.0
    %1849 = vmatprep.subr.mxu0 0.0
    %1850 = vmatpush1.msra.mxu0 0.0
    %1851 = vmatprep.subr.mxu0 0.0
    %1852 = vmatpush1.msra.mxu0 0.0
    %1853 = vmatprep.subr.mxu0 0.0
    %1854 = vmatpush1.msra.mxu0 0.0
    %1855 = vmatprep.subr.mxu0 0.0
    %1856 = vmatpush1.msra.mxu0 0.0
    %1857 = vmatprep.subr.mxu0 0.0
    %1858 = vmatpush1.msra.mxu0 0.0
    %1859 = vmatprep.subr.mxu0 0.0
    %1860 = vmatpush1.msra.mxu0 0.0
    %1861 = vmatprep.subr.mxu0 0.0
    %1862 = vmatpush1.msra.mxu0 0.0
    %1863 = vmatprep.subr.mxu0 0.0
    %1864 = vmatpush1.msra.mxu0 0.0
    %1865 = vmatprep.subr.mxu0 0.0
    %1866 = vmatpush1.msra.mxu0 0.0
    %1867 = vmatprep.subr.mxu0 0.0
    %1868 = vmatpush1.msra.mxu0 0.0
    %1869 = vmatprep.subr.mxu0 0.0
    %1870 = vmatpush1.msra.mxu0 0.0
    %1871 = vmatprep.subr.mxu0 0.0
    %1872 = vmatpush1.msra.mxu0 0.0
    %1873 = vmatprep.subr.mxu0 0.0
    %1874 = vmatpush1.msra.mxu0 0.0
    %1875 = vmatprep.subr.mxu0 0.0
    %1876 = vmatpush1.msra.mxu0 0.0
    %1877 = vmatprep.subr.mxu0 0.0
    %1878 = vmatpush1.msra.mxu0 0.0
    %1879 = vmatprep.subr.mxu0 0.0
    %1880 = vmatpush1.msra.mxu0 0.0
    %1881 = vmatprep.subr.mxu0 0.0
    %1882 = vmatpush1.msra.mxu0 0.0
    %1883 = vmatprep.subr.mxu0 0.0
    %1884 = vmatpush1.msra.mxu0 0.0
    %1885 = vmatprep.subr.mxu0 0.0
    %1886 = vmatpush1.msra.mxu0 0.0
    %1887 = vmatprep.subr.mxu0 0.0
    %1888 = vmatpush1.msra.mxu0 0.0
    %1889 = vmatprep.mubr.f32.mxu0 0.0
    %1890 = vmatmul.mubr.f32.gmra.mrb[0].mxu0 %v1823
    %v1891 = vpop.f32.mrb[0].mxu0
    %v1892 = vadd.f32 %v1820, %v1891
    %v1893 = vpop.f32.mrb[0].mxu0
    %1894 = vdwg.mxu0
    %v1895 = vmax.f32 %v1360, 0.0
    %v1896 = vmax.f32 %v1436, 0.0
    %v1897 = vmax.f32 %v1512, 0.0
    %v1898 = vmax.f32 %v1588, 0.0
    %v1899 = vmax.f32 %v1664, 0.0
    %v1900 = vmax.f32 %v1740, 0.0
    %v1901 = vmax.f32 %v1816, 0.0
    %v1902 = vmax.f32 %v1892, 0.0
    %v1903 = vlaneseq
    %v1904 = vshrl.u32 %v1903, 7
    %v1905 = vsub.s32 0, %v1904
    %v1906 = vrot.slane %v75, %v1905
    %s1908 = sor.u32 256, 96
    %1909 = vbcast.lane.b32.xlu0 %v1906, %s1908
    %v1910 = vpop.permute.xlu0 %1909
    %s1912 = sor.u32 256, 104
    %1913 = vbcast.lane.b32.xlu0 %v1906, %s1912
    %v1914 = vpop.permute.xlu0 %1913
    %v1915 = vlaneseq
    %v1916 = vshrl.u32 %v1915, 7
    %v1917 = vsub.s32 1, %v1916
    %v1918 = vrot.slane %v75, %v1917
    %s1920 = sor.u32 256, 96
    %1921 = vbcast.lane.b32.xlu0 %v1918, %s1920
    %v1922 = vpop.permute.xlu0 %1921
    %s1924 = sor.u32 256, 104
    %1925 = vbcast.lane.b32.xlu0 %v1918, %s1924
    %v1926 = vpop.permute.xlu0 %1925
    %v1927 = vlaneseq
    %v1928 = vshrl.u32 %v1927, 7
    %v1929 = vsub.s32 2, %v1928
    %v1930 = vrot.slane %v75, %v1929
    %s1932 = sor.u32 256, 96
    %1933 = vbcast.lane.b32.xlu0 %v1930, %s1932
    %v1934 = vpop.permute.xlu0 %1933
    %s1936 = sor.u32 256, 104
    %1937 = vbcast.lane.b32.xlu0 %v1930, %s1936
    %v1938 = vpop.permute.xlu0 %1937
    %v1939 = vlaneseq
    %v1940 = vshrl.u32 %v1939, 7
    %v1941 = vsub.s32 3, %v1940
    %v1942 = vrot.slane %v75, %v1941
    %s1944 = sor.u32 256, 96
    %1945 = vbcast.lane.b32.xlu0 %v1942, %s1944
    %v1946 = vpop.permute.xlu0 %1945
    %s1948 = sor.u32 256, 104
    %1949 = vbcast.lane.b32.xlu0 %v1942, %s1948
    %v1950 = vpop.permute.xlu0 %1949
    %v1951 = vlaneseq
    %v1952 = vshrl.u32 %v1951, 7
    %v1953 = vsub.s32 4, %v1952
    %v1954 = vrot.slane %v75, %v1953
    %s1956 = sor.u32 256, 96
    %1957 = vbcast.lane.b32.xlu0 %v1954, %s1956
    %v1958 = vpop.permute.xlu0 %1957
    %s1960 = sor.u32 256, 104
    %1961 = vbcast.lane.b32.xlu0 %v1954, %s1960
    %v1962 = vpop.permute.xlu0 %1961
    %v1963 = vlaneseq
    %v1964 = vshrl.u32 %v1963, 7
    %v1965 = vsub.s32 5, %v1964
    %v1966 = vrot.slane %v75, %v1965
    %s1968 = sor.u32 256, 96
    %1969 = vbcast.lane.b32.xlu0 %v1966, %s1968
    %v1970 = vpop.permute.xlu0 %1969
    %s1972 = sor.u32 256, 104
    %1973 = vbcast.lane.b32.xlu0 %v1966, %s1972
    %v1974 = vpop.permute.xlu0 %1973
    %v1975 = vlaneseq
    %v1976 = vshrl.u32 %v1975, 7
    %v1977 = vsub.s32 6, %v1976
    %v1978 = vrot.slane %v75, %v1977
    %s1980 = sor.u32 256, 96
    %1981 = vbcast.lane.b32.xlu0 %v1978, %s1980
    %v1982 = vpop.permute.xlu0 %1981
    %s1984 = sor.u32 256, 104
    %1985 = vbcast.lane.b32.xlu0 %v1978, %s1984
    %v1986 = vpop.permute.xlu0 %1985
    %v1987 = vlaneseq
    %v1988 = vshrl.u32 %v1987, 7
    %v1989 = vsub.s32 7, %v1988
    %v1990 = vrot.slane %v75, %v1989
    %s1992 = sor.u32 256, 96
    %1993 = vbcast.lane.b32.xlu0 %v1990, %s1992
    %v1994 = vpop.permute.xlu0 %1993
    %s1996 = sor.u32 256, 104
    %1997 = vbcast.lane.b32.xlu0 %v1990, %s1996
    %v1998 = vpop.permute.xlu0 %1997
    %1999 = vrot.lane.b32.xlu0 %v1257, 16
    %v2000 = vpop.permute.xlu0 %1999
    %v2003 = vsel %vm1289, %v1895, 0
    %2005 = vmatprep.subr.mxu0 0.0
    %2006 = vmatpush1.msra.mxu0 %v1910
    %2007 = vmatprep.subr.mxu0 0.0
    %2008 = vmatpush1.msra.mxu0 %v1914
    %2009 = vmatprep.subr.mxu0 0.0
    %2010 = vmatpush1.msra.mxu0 0.0
    %2011 = vmatprep.subr.mxu0 0.0
    %2012 = vmatpush1.msra.mxu0 0.0
    %2013 = vmatprep.subr.mxu0 0.0
    %2014 = vmatpush1.msra.mxu0 0.0
    %2015 = vmatprep.subr.mxu0 0.0
    %2016 = vmatpush1.msra.mxu0 0.0
    %2017 = vmatprep.subr.mxu0 0.0
    %2018 = vmatpush1.msra.mxu0 0.0
    %2019 = vmatprep.subr.mxu0 0.0
    %2020 = vmatpush1.msra.mxu0 0.0
    %2021 = vmatprep.subr.mxu0 0.0
    %2022 = vmatpush1.msra.mxu0 0.0
    %2023 = vmatprep.subr.mxu0 0.0
    %2024 = vmatpush1.msra.mxu0 0.0
    %2025 = vmatprep.subr.mxu0 0.0
    %2026 = vmatpush1.msra.mxu0 0.0
    %2027 = vmatprep.subr.mxu0 0.0
    %2028 = vmatpush1.msra.mxu0 0.0
    %2029 = vmatprep.subr.mxu0 0.0
    %2030 = vmatpush1.msra.mxu0 0.0
    %2031 = vmatprep.subr.mxu0 0.0
    %2032 = vmatpush1.msra.mxu0 0.0
    %2033 = vmatprep.subr.mxu0 0.0
    %2034 = vmatpush1.msra.mxu0 0.0
    %2035 = vmatprep.subr.mxu0 0.0
    %2036 = vmatpush1.msra.mxu0 0.0
    %2037 = vmatprep.subr.mxu0 0.0
    %2038 = vmatpush1.msra.mxu0 0.0
    %2039 = vmatprep.subr.mxu0 0.0
    %2040 = vmatpush1.msra.mxu0 0.0
    %2041 = vmatprep.subr.mxu0 0.0
    %2042 = vmatpush1.msra.mxu0 0.0
    %2043 = vmatprep.subr.mxu0 0.0
    %2044 = vmatpush1.msra.mxu0 0.0
    %2045 = vmatprep.subr.mxu0 0.0
    %2046 = vmatpush1.msra.mxu0 0.0
    %2047 = vmatprep.subr.mxu0 0.0
    %2048 = vmatpush1.msra.mxu0 0.0
    %2049 = vmatprep.subr.mxu0 0.0
    %2050 = vmatpush1.msra.mxu0 0.0
    %2051 = vmatprep.subr.mxu0 0.0
    %2052 = vmatpush1.msra.mxu0 0.0
    %2053 = vmatprep.subr.mxu0 0.0
    %2054 = vmatpush1.msra.mxu0 0.0
    %2055 = vmatprep.subr.mxu0 0.0
    %2056 = vmatpush1.msra.mxu0 0.0
    %2057 = vmatprep.subr.mxu0 0.0
    %2058 = vmatpush1.msra.mxu0 0.0
    %2059 = vmatprep.subr.mxu0 0.0
    %2060 = vmatpush1.msra.mxu0 0.0
    %2061 = vmatprep.subr.mxu0 0.0
    %2062 = vmatpush1.msra.mxu0 0.0
    %2063 = vmatprep.subr.mxu0 0.0
    %2064 = vmatpush1.msra.mxu0 0.0
    %2065 = vmatprep.subr.mxu0 0.0
    %2066 = vmatpush1.msra.mxu0 0.0
    %2067 = vmatprep.subr.mxu0 0.0
    %2068 = vmatpush1.msra.mxu0 0.0
    %2069 = vmatprep.mubr.f32.mxu0 0.0
    %2070 = vmatmul.mubr.f32.gmra.mrb[0].mxu0 %v2003
    %v2071 = vpop.f32.mrb[0].mxu0
    %v2072 = vadd.f32 %v2000, %v2071
    %v2073 = vpop.f32.mrb[0].mxu0
    %2074 = vdwg.mxu0
    %2075 = vrot.lane.b32.xlu0 %v1261, 16
    %v2076 = vpop.permute.xlu0 %2075
    %v2079 = vsel %vm1289, %v1896, 0
    %2081 = vmatprep.subr.mxu0 0.0
    %2082 = vmatpush1.msra.mxu0 %v1922
    %2083 = vmatprep.subr.mxu0 0.0
    %2084 = vmatpush1.msra.mxu0 %v1926
    %2085 = vmatprep.subr.mxu0 0.0
    %2086 = vmatpush1.msra.mxu0 0.0
    %2087 = vmatprep.subr.mxu0 0.0
    %2088 = vmatpush1.msra.mxu0 0.0
    %2089 = vmatprep.subr.mxu0 0.0
    %2090 = vmatpush1.msra.mxu0 0.0
    %2091 = vmatprep.subr.mxu0 0.0
    %2092 = vmatpush1.msra.mxu0 0.0
    %2093 = vmatprep.subr.mxu0 0.0
    %2094 = vmatpush1.msra.mxu0 0.0
    %2095 = vmatprep.subr.mxu0 0.0
    %2096 = vmatpush1.msra.mxu0 0.0
    %2097 = vmatprep.subr.mxu0 0.0
    %2098 = vmatpush1.msra.mxu0 0.0
    %2099 = vmatprep.subr.mxu0 0.0
    %2100 = vmatpush1.msra.mxu0 0.0
    %2101 = vmatprep.subr.mxu0 0.0
    %2102 = vmatpush1.msra.mxu0 0.0
    %2103 = vmatprep.subr.mxu0 0.0
    %2104 = vmatpush1.msra.mxu0 0.0
    %2105 = vmatprep.subr.mxu0 0.0
    %2106 = vmatpush1.msra.mxu0 0.0
    %2107 = vmatprep.subr.mxu0 0.0
    %2108 = vmatpush1.msra.mxu0 0.0
    %2109 = vmatprep.subr.mxu0 0.0
    %2110 = vmatpush1.msra.mxu0 0.0
    %2111 = vmatprep.subr.mxu0 0.0
    %2112 = vmatpush1.msra.mxu0 0.0
    %2113 = vmatprep.subr.mxu0 0.0
    %2114 = vmatpush1.msra.mxu0 0.0
    %2115 = vmatprep.subr.mxu0 0.0
    %2116 = vmatpush1.msra.mxu0 0.0
    %2117 = vmatprep.subr.mxu0 0.0
    %2118 = vmatpush1.msra.mxu0 0.0
    %2119 = vmatprep.subr.mxu0 0.0
    %2120 = vmatpush1.msra.mxu0 0.0
    %2121 = vmatprep.subr.mxu0 0.0
    %2122 = vmatpush1.msra.mxu0 0.0
    %2123 = vmatprep.subr.mxu0 0.0
    %2124 = vmatpush1.msra.mxu0 0.0
    %2125 = vmatprep.subr.mxu0 0.0
    %2126 = vmatpush1.msra.mxu0 0.0
    %2127 = vmatprep.subr.mxu0 0.0
    %2128 = vmatpush1.msra.mxu0 0.0
    %2129 = vmatprep.subr.mxu0 0.0
    %2130 = vmatpush1.msra.mxu0 0.0
    %2131 = vmatprep.subr.mxu0 0.0
    %2132 = vmatpush1.msra.mxu0 0.0
    %2133 = vmatprep.subr.mxu0 0.0
    %2134 = vmatpush1.msra.mxu0 0.0
    %2135 = vmatprep.subr.mxu0 0.0
    %2136 = vmatpush1.msra.mxu0 0.0
    %2137 = vmatprep.subr.mxu0 0.0
    %2138 = vmatpush1.msra.mxu0 0.0
    %2139 = vmatprep.subr.mxu0 0.0
    %2140 = vmatpush1.msra.mxu0 0.0
    %2141 = vmatprep.subr.mxu0 0.0
    %2142 = vmatpush1.msra.mxu0 0.0
    %2143 = vmatprep.subr.mxu0 0.0
    %2144 = vmatpush1.msra.mxu0 0.0
    %2145 = vmatprep.mubr.f32.mxu0 0.0
    %2146 = vmatmul.mubr.f32.gmra.mrb[0].mxu0 %v2079
    %v2147 = vpop.f32.mrb[0].mxu0
    %v2148 = vadd.f32 %v2076, %v2147
    %v2149 = vpop.f32.mrb[0].mxu0
    %2150 = vdwg.mxu0
    %2151 = vrot.lane.b32.xlu0 %v1265, 16
    %v2152 = vpop.permute.xlu0 %2151
    %v2155 = vsel %vm1289, %v1897, 0
    %2157 = vmatprep.subr.mxu0 0.0
    %2158 = vmatpush1.msra.mxu0 %v1934
    %2159 = vmatprep.subr.mxu0 0.0
    %2160 = vmatpush1.msra.mxu0 %v1938
    %2161 = vmatprep.subr.mxu0 0.0
    %2162 = vmatpush1.msra.mxu0 0.0
    %2163 = vmatprep.subr.mxu0 0.0
    %2164 = vmatpush1.msra.mxu0 0.0
    %2165 = vmatprep.subr.mxu0 0.0
    %2166 = vmatpush1.msra.mxu0 0.0
    %2167 = vmatprep.subr.mxu0 0.0
    %2168 = vmatpush1.msra.mxu0 0.0
    %2169 = vmatprep.subr.mxu0 0.0
    %2170 = vmatpush1.msra.mxu0 0.0
    %2171 = vmatprep.subr.mxu0 0.0
    %2172 = vmatpush1.msra.mxu0 0.0
    %2173 = vmatprep.subr.mxu0 0.0
    %2174 = vmatpush1.msra.mxu0 0.0
    %2175 = vmatprep.subr.mxu0 0.0
    %2176 = vmatpush1.msra.mxu0 0.0
    %2177 = vmatprep.subr.mxu0 0.0
    %2178 = vmatpush1.msra.mxu0 0.0
    %2179 = vmatprep.subr.mxu0 0.0
    %2180 = vmatpush1.msra.mxu0 0.0
    %2181 = vmatprep.subr.mxu0 0.0
    %2182 = vmatpush1.msra.mxu0 0.0
    %2183 = vmatprep.subr.mxu0 0.0
    %2184 = vmatpush1.msra.mxu0 0.0
    %2185 = vmatprep.subr.mxu0 0.0
    %2186 = vmatpush1.msra.mxu0 0.0
    %2187 = vmatprep.subr.mxu0 0.0
    %2188 = vmatpush1.msra.mxu0 0.0
    %2189 = vmatprep.subr.mxu0 0.0
    %2190 = vmatpush1.msra.mxu0 0.0
    %2191 = vmatprep.subr.mxu0 0.0
    %2192 = vmatpush1.msra.mxu0 0.0
    %2193 = vmatprep.subr.mxu0 0.0
    %2194 = vmatpush1.msra.mxu0 0.0
    %2195 = vmatprep.subr.mxu0 0.0
    %2196 = vmatpush1.msra.mxu0 0.0
    %2197 = vmatprep.subr.mxu0 0.0
    %2198 = vmatpush1.msra.mxu0 0.0
    %2199 = vmatprep.subr.mxu0 0.0
    %2200 = vmatpush1.msra.mxu0 0.0
    %2201 = vmatprep.subr.mxu0 0.0
    %2202 = vmatpush1.msra.mxu0 0.0
    %2203 = vmatprep.subr.mxu0 0.0
    %2204 = vmatpush1.msra.mxu0 0.0
    %2205 = vmatprep.subr.mxu0 0.0
    %2206 = vmatpush1.msra.mxu0 0.0
    %2207 = vmatprep.subr.mxu0 0.0
    %2208 = vmatpush1.msra.mxu0 0.0
    %2209 = vmatprep.subr.mxu0 0.0
    %2210 = vmatpush1.msra.mxu0 0.0
    %2211 = vmatprep.subr.mxu0 0.0
    %2212 = vmatpush1.msra.mxu0 0.0
    %2213 = vmatprep.subr.mxu0 0.0
    %2214 = vmatpush1.msra.mxu0 0.0
    %2215 = vmatprep.subr.mxu0 0.0
    %2216 = vmatpush1.msra.mxu0 0.0
    %2217 = vmatprep.subr.mxu0 0.0
    %2218 = vmatpush1.msra.mxu0 0.0
    %2219 = vmatprep.subr.mxu0 0.0
    %2220 = vmatpush1.msra.mxu0 0.0
    %2221 = vmatprep.mubr.f32.mxu0 0.0
    %2222 = vmatmul.mubr.f32.gmra.mrb[0].mxu0 %v2155
    %v2223 = vpop.f32.mrb[0].mxu0
    %v2224 = vadd.f32 %v2152, %v2223
    %v2225 = vpop.f32.mrb[0].mxu0
    %2226 = vdwg.mxu0
    %2227 = vrot.lane.b32.xlu0 %v1269, 16
    %v2228 = vpop.permute.xlu0 %2227
    %v2231 = vsel %vm1289, %v1898, 0
    %2233 = vmatprep.subr.mxu0 0.0
    %2234 = vmatpush1.msra.mxu0 %v1946
    %2235 = vmatprep.subr.mxu0 0.0
    %2236 = vmatpush1.msra.mxu0 %v1950
    %2237 = vmatprep.subr.mxu0 0.0
    %2238 = vmatpush1.msra.mxu0 0.0
    %2239 = vmatprep.subr.mxu0 0.0
    %2240 = vmatpush1.msra.mxu0 0.0
    %2241 = vmatprep.subr.mxu0 0.0
    %2242 = vmatpush1.msra.mxu0 0.0
    %2243 = vmatprep.subr.mxu0 0.0
    %2244 = vmatpush1.msra.mxu0 0.0
    %2245 = vmatprep.subr.mxu0 0.0
    %2246 = vmatpush1.msra.mxu0 0.0
    %2247 = vmatprep.subr.mxu0 0.0
    %2248 = vmatpush1.msra.mxu0 0.0
    %2249 = vmatprep.subr.mxu0 0.0
    %2250 = vmatpush1.msra.mxu0 0.0
    %2251 = vmatprep.subr.mxu0 0.0
    %2252 = vmatpush1.msra.mxu0 0.0
    %2253 = vmatprep.subr.mxu0 0.0
    %2254 = vmatpush1.msra.mxu0 0.0
    %2255 = vmatprep.subr.mxu0 0.0
    %2256 = vmatpush1.msra.mxu0 0.0
    %2257 = vmatprep.subr.mxu0 0.0
    %2258 = vmatpush1.msra.mxu0 0.0
    %2259 = vmatprep.subr.mxu0 0.0
    %2260 = vmatpush1.msra.mxu0 0.0
    %2261 = vmatprep.subr.mxu0 0.0
    %2262 = vmatpush1.msra.mxu0 0.0
    %2263 = vmatprep.subr.mxu0 0.0
    %2264 = vmatpush1.msra.mxu0 0.0
    %2265 = vmatprep.subr.mxu0 0.0
    %2266 = vmatpush1.msra.mxu0 0.0
    %2267 = vmatprep.subr.mxu0 0.0
    %2268 = vmatpush1.msra.mxu0 0.0
    %2269 = vmatprep.subr.mxu0 0.0
    %2270 = vmatpush1.msra.mxu0 0.0
    %2271 = vmatprep.subr.mxu0 0.0
    %2272 = vmatpush1.msra.mxu0 0.0
    %2273 = vmatprep.subr.mxu0 0.0
    %2274 = vmatpush1.msra.mxu0 0.0
    %2275 = vmatprep.subr.mxu0 0.0
    %2276 = vmatpush1.msra.mxu0 0.0
    %2277 = vmatprep.subr.mxu0 0.0
    %2278 = vmatpush1.msra.mxu0 0.0
    %2279 = vmatprep.subr.mxu0 0.0
    %2280 = vmatpush1.msra.mxu0 0.0
    %2281 = vmatprep.subr.mxu0 0.0
    %2282 = vmatpush1.msra.mxu0 0.0
    %2283 = vmatprep.subr.mxu0 0.0
    %2284 = vmatpush1.msra.mxu0 0.0
    %2285 = vmatprep.subr.mxu0 0.0
    %2286 = vmatpush1.msra.mxu0 0.0
    %2287 = vmatprep.subr.mxu0 0.0
    %2288 = vmatpush1.msra.mxu0 0.0
    %2289 = vmatprep.subr.mxu0 0.0
    %2290 = vmatpush1.msra.mxu0 0.0
    %2291 = vmatprep.subr.mxu0 0.0
    %2292 = vmatpush1.msra.mxu0 0.0
    %2293 = vmatprep.subr.mxu0 0.0
    %2294 = vmatpush1.msra.mxu0 0.0
    %2295 = vmatprep.subr.mxu0 0.0
    %2296 = vmatpush1.msra.mxu0 0.0
    %2297 = vmatprep.mubr.f32.mxu0 0.0
    %2298 = vmatmul.mubr.f32.gmra.mrb[0].mxu0 %v2231
    %v2299 = vpop.f32.mrb[0].mxu0
    %v2300 = vadd.f32 %v2228, %v2299
    %v2301 = vpop.f32.mrb[0].mxu0
    %2302 = vdwg.mxu0
    %2303 = vrot.lane.b32.xlu0 %v1273, 16
    %v2304 = vpop.permute.xlu0 %2303
    %v2307 = vsel %vm1289, %v1899, 0
    %2309 = vmatprep.subr.mxu0 0.0
    %2310 = vmatpush1.msra.mxu0 %v1958
    %2311 = vmatprep.subr.mxu0 0.0
    %2312 = vmatpush1.msra.mxu0 %v1962
    %2313 = vmatprep.subr.mxu0 0.0
    %2314 = vmatpush1.msra.mxu0 0.0
    %2315 = vmatprep.subr.mxu0 0.0
    %2316 = vmatpush1.msra.mxu0 0.0
    %2317 = vmatprep.subr.mxu0 0.0
    %2318 = vmatpush1.msra.mxu0 0.0
    %2319 = vmatprep.subr.mxu0 0.0
    %2320 = vmatpush1.msra.mxu0 0.0
    %2321 = vmatprep.subr.mxu0 0.0
    %2322 = vmatpush1.msra.mxu0 0.0
    %2323 = vmatprep.subr.mxu0 0.0
    %2324 = vmatpush1.msra.mxu0 0.0
    %2325 = vmatprep.subr.mxu0 0.0
    %2326 = vmatpush1.msra.mxu0 0.0
    %2327 = vmatprep.subr.mxu0 0.0
    %2328 = vmatpush1.msra.mxu0 0.0
    %2329 = vmatprep.subr.mxu0 0.0
    %2330 = vmatpush1.msra.mxu0 0.0
    %2331 = vmatprep.subr.mxu0 0.0
    %2332 = vmatpush1.msra.mxu0 0.0
    %2333 = vmatprep.subr.mxu0 0.0
    %2334 = vmatpush1.msra.mxu0 0.0
    %2335 = vmatprep.subr.mxu0 0.0
    %2336 = vmatpush1.msra.mxu0 0.0
    %2337 = vmatprep.subr.mxu0 0.0
    %2338 = vmatpush1.msra.mxu0 0.0
    %2339 = vmatprep.subr.mxu0 0.0
    %2340 = vmatpush1.msra.mxu0 0.0
    %2341 = vmatprep.subr.mxu0 0.0
    %2342 = vmatpush1.msra.mxu0 0.0
    %2343 = vmatprep.subr.mxu0 0.0
    %2344 = vmatpush1.msra.mxu0 0.0
    %2345 = vmatprep.subr.mxu0 0.0
    %2346 = vmatpush1.msra.mxu0 0.0
    %2347 = vmatprep.subr.mxu0 0.0
    %2348 = vmatpush1.msra.mxu0 0.0
    %2349 = vmatprep.subr.mxu0 0.0
    %2350 = vmatpush1.msra.mxu0 0.0
    %2351 = vmatprep.subr.mxu0 0.0
    %2352 = vmatpush1.msra.mxu0 0.0
    %2353 = vmatprep.subr.mxu0 0.0
    %2354 = vmatpush1.msra.mxu0 0.0
    %2355 = vmatprep.subr.mxu0 0.0
    %2356 = vmatpush1.msra.mxu0 0.0
    %2357 = vmatprep.subr.mxu0 0.0
    %2358 = vmatpush1.msra.mxu0 0.0
    %2359 = vmatprep.subr.mxu0 0.0
    %2360 = vmatpush1.msra.mxu0 0.0
    %2361 = vmatprep.subr.mxu0 0.0
    %2362 = vmatpush1.msra.mxu0 0.0
    %2363 = vmatprep.subr.mxu0 0.0
    %2364 = vmatpush1.msra.mxu0 0.0
    %2365 = vmatprep.subr.mxu0 0.0
    %2366 = vmatpush1.msra.mxu0 0.0
    %2367 = vmatprep.subr.mxu0 0.0
    %2368 = vmatpush1.msra.mxu0 0.0
    %2369 = vmatprep.subr.mxu0 0.0
    %2370 = vmatpush1.msra.mxu0 0.0
    %2371 = vmatprep.subr.mxu0 0.0
    %2372 = vmatpush1.msra.mxu0 0.0
    %2373 = vmatprep.mubr.f32.mxu0 0.0
    %2374 = vmatmul.mubr.f32.gmra.mrb[0].mxu0 %v2307
    %v2375 = vpop.f32.mrb[0].mxu0
    %v2376 = vadd.f32 %v2304, %v2375
    %v2377 = vpop.f32.mrb[0].mxu0
    %2378 = vdwg.mxu0
    %2379 = vrot.lane.b32.xlu0 %v1277, 16
    %v2380 = vpop.permute.xlu0 %2379
    %v2383 = vsel %vm1289, %v1900, 0
    %2385 = vmatprep.subr.mxu0 0.0
    %2386 = vmatpush1.msra.mxu0 %v1970
    %2387 = vmatprep.subr.mxu0 0.0
    %2388 = vmatpush1.msra.mxu0 %v1974
    %2389 = vmatprep.subr.mxu0 0.0
    %2390 = vmatpush1.msra.mxu0 0.0
    %2391 = vmatprep.subr.mxu0 0.0
    %2392 = vmatpush1.msra.mxu0 0.0
    %2393 = vmatprep.subr.mxu0 0.0
    %2394 = vmatpush1.msra.mxu0 0.0
    %2395 = vmatprep.subr.mxu0 0.0
    %2396 = vmatpush1.msra.mxu0 0.0
    %2397 = vmatprep.subr.mxu0 0.0
    %2398 = vmatpush1.msra.mxu0 0.0
    %2399 = vmatprep.subr.mxu0 0.0
    %2400 = vmatpush1.msra.mxu0 0.0
    %2401 = vmatprep.subr.mxu0 0.0
    %2402 = vmatpush1.msra.mxu0 0.0
    %2403 = vmatprep.subr.mxu0 0.0
    %2404 = vmatpush1.msra.mxu0 0.0
    %2405 = vmatprep.subr.mxu0 0.0
    %2406 = vmatpush1.msra.mxu0 0.0
    %2407 = vmatprep.subr.mxu0 0.0
    %2408 = vmatpush1.msra.mxu0 0.0
    %2409 = vmatprep.subr.mxu0 0.0
    %2410 = vmatpush1.msra.mxu0 0.0
    %2411 = vmatprep.subr.mxu0 0.0
    %2412 = vmatpush1.msra.mxu0 0.0
    %2413 = vmatprep.subr.mxu0 0.0
    %2414 = vmatpush1.msra.mxu0 0.0
    %2415 = vmatprep.subr.mxu0 0.0
    %2416 = vmatpush1.msra.mxu0 0.0
    %2417 = vmatprep.subr.mxu0 0.0
    %2418 = vmatpush1.msra.mxu0 0.0
    %2419 = vmatprep.subr.mxu0 0.0
    %2420 = vmatpush1.msra.mxu0 0.0
    %2421 = vmatprep.subr.mxu0 0.0
    %2422 = vmatpush1.msra.mxu0 0.0
    %2423 = vmatprep.subr.mxu0 0.0
    %2424 = vmatpush1.msra.mxu0 0.0
    %2425 = vmatprep.subr.mxu0 0.0
    %2426 = vmatpush1.msra.mxu0 0.0
    %2427 = vmatprep.subr.mxu0 0.0
    %2428 = vmatpush1.msra.mxu0 0.0
    %2429 = vmatprep.subr.mxu0 0.0
    %2430 = vmatpush1.msra.mxu0 0.0
    %2431 = vmatprep.subr.mxu0 0.0
    %2432 = vmatpush1.msra.mxu0 0.0
    %2433 = vmatprep.subr.mxu0 0.0
    %2434 = vmatpush1.msra.mxu0 0.0
    %2435 = vmatprep.subr.mxu0 0.0
    %2436 = vmatpush1.msra.mxu0 0.0
    %2437 = vmatprep.subr.mxu0 0.0
    %2438 = vmatpush1.msra.mxu0 0.0
    %2439 = vmatprep.subr.mxu0 0.0
    %2440 = vmatpush1.msra.mxu0 0.0
    %2441 = vmatprep.subr.mxu0 0.0
    %2442 = vmatpush1.msra.mxu0 0.0
    %2443 = vmatprep.subr.mxu0 0.0
    %2444 = vmatpush1.msra.mxu0 0.0
    %2445 = vmatprep.subr.mxu0 0.0
    %2446 = vmatpush1.msra.mxu0 0.0
    %2447 = vmatprep.subr.mxu0 0.0
    %2448 = vmatpush1.msra.mxu0 0.0
    %2449 = vmatprep.mubr.f32.mxu0 0.0
    %2450 = vmatmul.mubr.f32.gmra.mrb[0].mxu0 %v2383
    %v2451 = vpop.f32.mrb[0].mxu0
    %v2452 = vadd.f32 %v2380, %v2451
    %v2453 = vpop.f32.mrb[0].mxu0
    %2454 = vdwg.mxu0
    %2455 = vrot.lane.b32.xlu0 %v1281, 16
    %v2456 = vpop.permute.xlu0 %2455
    %v2459 = vsel %vm1289, %v1901, 0
    %2461 = vmatprep.subr.mxu0 0.0
    %2462 = vmatpush1.msra.mxu0 %v1982
    %2463 = vmatprep.subr.mxu0 0.0
    %2464 = vmatpush1.msra.mxu0 %v1986
    %2465 = vmatprep.subr.mxu0 0.0
    %2466 = vmatpush1.msra.mxu0 0.0
    %2467 = vmatprep.subr.mxu0 0.0
    %2468 = vmatpush1.msra.mxu0 0.0
    %2469 = vmatprep.subr.mxu0 0.0
    %2470 = vmatpush1.msra.mxu0 0.0
    %2471 = vmatprep.subr.mxu0 0.0
    %2472 = vmatpush1.msra.mxu0 0.0
    %2473 = vmatprep.subr.mxu0 0.0
    %2474 = vmatpush1.msra.mxu0 0.0
    %2475 = vmatprep.subr.mxu0 0.0
    %2476 = vmatpush1.msra.mxu0 0.0
    %2477 = vmatprep.subr.mxu0 0.0
    %2478 = vmatpush1.msra.mxu0 0.0
    %2479 = vmatprep.subr.mxu0 0.0
    %2480 = vmatpush1.msra.mxu0 0.0
    %2481 = vmatprep.subr.mxu0 0.0
    %2482 = vmatpush1.msra.mxu0 0.0
    %2483 = vmatprep.subr.mxu0 0.0
    %2484 = vmatpush1.msra.mxu0 0.0
    %2485 = vmatprep.subr.mxu0 0.0
    %2486 = vmatpush1.msra.mxu0 0.0
    %2487 = vmatprep.subr.mxu0 0.0
    %2488 = vmatpush1.msra.mxu0 0.0
    %2489 = vmatprep.subr.mxu0 0.0
    %2490 = vmatpush1.msra.mxu0 0.0
    %2491 = vmatprep.subr.mxu0 0.0
    %2492 = vmatpush1.msra.mxu0 0.0
    %2493 = vmatprep.subr.mxu0 0.0
    %2494 = vmatpush1.msra.mxu0 0.0
    %2495 = vmatprep.subr.mxu0 0.0
    %2496 = vmatpush1.msra.mxu0 0.0
    %2497 = vmatprep.subr.mxu0 0.0
    %2498 = vmatpush1.msra.mxu0 0.0
    %2499 = vmatprep.subr.mxu0 0.0
    %2500 = vmatpush1.msra.mxu0 0.0
    %2501 = vmatprep.subr.mxu0 0.0
    %2502 = vmatpush1.msra.mxu0 0.0
    %2503 = vmatprep.subr.mxu0 0.0
    %2504 = vmatpush1.msra.mxu0 0.0
    %2505 = vmatprep.subr.mxu0 0.0
    %2506 = vmatpush1.msra.mxu0 0.0
    %2507 = vmatprep.subr.mxu0 0.0
    %2508 = vmatpush1.msra.mxu0 0.0
    %2509 = vmatprep.subr.mxu0 0.0
    %2510 = vmatpush1.msra.mxu0 0.0
    %2511 = vmatprep.subr.mxu0 0.0
    %2512 = vmatpush1.msra.mxu0 0.0
    %2513 = vmatprep.subr.mxu0 0.0
    %2514 = vmatpush1.msra.mxu0 0.0
    %2515 = vmatprep.subr.mxu0 0.0
    %2516 = vmatpush1.msra.mxu0 0.0
    %2517 = vmatprep.subr.mxu0 0.0
    %2518 = vmatpush1.msra.mxu0 0.0
    %2519 = vmatprep.subr.mxu0 0.0
    %2520 = vmatpush1.msra.mxu0 0.0
    %2521 = vmatprep.subr.mxu0 0.0
    %2522 = vmatpush1.msra.mxu0 0.0
    %2523 = vmatprep.subr.mxu0 0.0
    %2524 = vmatpush1.msra.mxu0 0.0
    %2525 = vmatprep.mubr.f32.mxu0 0.0
    %2526 = vmatmul.mubr.f32.gmra.mrb[0].mxu0 %v2459
    %v2527 = vpop.f32.mrb[0].mxu0
    %v2528 = vadd.f32 %v2456, %v2527
    %v2529 = vpop.f32.mrb[0].mxu0
    %2530 = vdwg.mxu0
    %2531 = vrot.lane.b32.xlu0 %v1285, 16
    %v2532 = vpop.permute.xlu0 %2531
    %v2535 = vsel %vm1289, %v1902, 0
    %2537 = vmatprep.subr.mxu0 0.0
    %2538 = vmatpush1.msra.mxu0 %v1994
    %2539 = vmatprep.subr.mxu0 0.0
    %2540 = vmatpush1.msra.mxu0 %v1998
    %2541 = vmatprep.subr.mxu0 0.0
    %2542 = vmatpush1.msra.mxu0 0.0
    %2543 = vmatprep.subr.mxu0 0.0
    %2544 = vmatpush1.msra.mxu0 0.0
    %2545 = vmatprep.subr.mxu0 0.0
    %2546 = vmatpush1.msra.mxu0 0.0
    %2547 = vmatprep.subr.mxu0 0.0
    %2548 = vmatpush1.msra.mxu0 0.0
    %2549 = vmatprep.subr.mxu0 0.0
    %2550 = vmatpush1.msra.mxu0 0.0
    %2551 = vmatprep.subr.mxu0 0.0
    %2552 = vmatpush1.msra.mxu0 0.0
    %2553 = vmatprep.subr.mxu0 0.0
    %2554 = vmatpush1.msra.mxu0 0.0
    %2555 = vmatprep.subr.mxu0 0.0
    %2556 = vmatpush1.msra.mxu0 0.0
    %2557 = vmatprep.subr.mxu0 0.0
    %2558 = vmatpush1.msra.mxu0 0.0
    %2559 = vmatprep.subr.mxu0 0.0
    %2560 = vmatpush1.msra.mxu0 0.0
    %2561 = vmatprep.subr.mxu0 0.0
    %2562 = vmatpush1.msra.mxu0 0.0
    %2563 = vmatprep.subr.mxu0 0.0
    %2564 = vmatpush1.msra.mxu0 0.0
    %2565 = vmatprep.subr.mxu0 0.0
    %2566 = vmatpush1.msra.mxu0 0.0
    %2567 = vmatprep.subr.mxu0 0.0
    %2568 = vmatpush1.msra.mxu0 0.0
    %2569 = vmatprep.subr.mxu0 0.0
    %2570 = vmatpush1.msra.mxu0 0.0
    %2571 = vmatprep.subr.mxu0 0.0
    %2572 = vmatpush1.msra.mxu0 0.0
    %2573 = vmatprep.subr.mxu0 0.0
    %2574 = vmatpush1.msra.mxu0 0.0
    %2575 = vmatprep.subr.mxu0 0.0
    %2576 = vmatpush1.msra.mxu0 0.0
    %2577 = vmatprep.subr.mxu0 0.0
    %2578 = vmatpush1.msra.mxu0 0.0
    %2579 = vmatprep.subr.mxu0 0.0
    %2580 = vmatpush1.msra.mxu0 0.0
    %2581 = vmatprep.subr.mxu0 0.0
    %2582 = vmatpush1.msra.mxu0 0.0
    %2583 = vmatprep.subr.mxu0 0.0
    %2584 = vmatpush1.msra.mxu0 0.0
    %2585 = vmatprep.subr.mxu0 0.0
    %2586 = vmatpush1.msra.mxu0 0.0
    %2587 = vmatprep.subr.mxu0 0.0
    %2588 = vmatpush1.msra.mxu0 0.0
    %2589 = vmatprep.subr.mxu0 0.0
    %2590 = vmatpush1.msra.mxu0 0.0
    %2591 = vmatprep.subr.mxu0 0.0
    %2592 = vmatpush1.msra.mxu0 0.0
    %2593 = vmatprep.subr.mxu0 0.0
    %2594 = vmatpush1.msra.mxu0 0.0
    %2595 = vmatprep.subr.mxu0 0.0
    %2596 = vmatpush1.msra.mxu0 0.0
    %2597 = vmatprep.subr.mxu0 0.0
    %2598 = vmatpush1.msra.mxu0 0.0
    %2599 = vmatprep.subr.mxu0 0.0
    %2600 = vmatpush1.msra.mxu0 0.0
    %2601 = vmatprep.mubr.f32.mxu0 0.0
    %2602 = vmatmul.mubr.f32.gmra.mrb[0].mxu0 %v2535
    %v2603 = vpop.f32.mrb[0].mxu0
    %v2604 = vadd.f32 %v2532, %v2603
    %v2605 = vpop.f32.mrb[0].mxu0
    %2606 = vdwg.mxu0
    %2615 = vset.pattern.permute.xlu0 0
    %2616 = vperm.xlu0 %2615, %v2072
    %v2617 = vpop.permute.xlu0 %2616
    %2618 = vset.pattern.permute.xlu0 0
    %2619 = vperm.xlu0 %2618, %v2148
    %v2620 = vpop.permute.xlu0 %2619
    %2621 = vset.pattern.permute.xlu0 0
    %2622 = vperm.xlu0 %2621, %v2224
    %v2623 = vpop.permute.xlu0 %2622
    %2624 = vset.pattern.permute.xlu0 0
    %2625 = vperm.xlu0 %2624, %v2300
    %v2626 = vpop.permute.xlu0 %2625
    %2627 = vset.pattern.permute.xlu0 0
    %2628 = vperm.xlu0 %2627, %v2376
    %v2629 = vpop.permute.xlu0 %2628
    %2630 = vset.pattern.permute.xlu0 0
    %2631 = vperm.xlu0 %2630, %v2452
    %v2632 = vpop.permute.xlu0 %2631
    %2633 = vset.pattern.permute.xlu0 0
    %2634 = vperm.xlu0 %2633, %v2528
    %v2635 = vpop.permute.xlu0 %2634
    %2636 = vset.pattern.permute.xlu0 0
    %2637 = vperm.xlu0 %2636, %v2604
    %v2638 = vpop.permute.xlu0 %2637
    %v2639 = vlaneseq
    %v2640 = vand.u32 %v2639, 127
    %v2641 = vlaneseq
    %v2642 = vshrl.u32 %v2641, 7
    %v2643 = vsub.s32 %v2640, %v2642
    %v2644 = vrot.slane %v2617, %v2643
    %v2645 = vlaneseq
    %v2646 = vshrl.u32 %v2645, 7
    %v2647 = vsub.s32 %v2640, %v2646
    %v2648 = vrot.slane %v2620, %v2647
    %v2649 = vlaneseq
    %v2650 = vshrl.u32 %v2649, 7
    %v2651 = vsub.s32 %v2640, %v2650
    %v2652 = vrot.slane %v2623, %v2651
    %v2653 = vlaneseq
    %v2654 = vshrl.u32 %v2653, 7
    %v2655 = vsub.s32 %v2640, %v2654
    %v2656 = vrot.slane %v2626, %v2655
    %v2657 = vlaneseq
    %v2658 = vshrl.u32 %v2657, 7
    %v2659 = vsub.s32 %v2640, %v2658
    %v2660 = vrot.slane %v2629, %v2659
    %v2661 = vlaneseq
    %v2662 = vshrl.u32 %v2661, 7
    %v2663 = vsub.s32 %v2640, %v2662
    %v2664 = vrot.slane %v2632, %v2663
    %v2665 = vlaneseq
    %v2666 = vshrl.u32 %v2665, 7
    %v2667 = vsub.s32 %v2640, %v2666
    %v2668 = vrot.slane %v2635, %v2667
    %v2669 = vlaneseq
    %v2670 = vshrl.u32 %v2669, 7
    %v2671 = vsub.s32 %v2640, %v2670
    %v2672 = vrot.slane %v2638, %v2671
    %vm2673 = vcmask 1041409
    %v2674 = vsel %vm2673, %v2648, %v2644
    %vm2675 = vcmask 1042434
    %v2676 = vsel %vm2675, %v2652, %v2674
    %vm2677 = vcmask 1043459
    %v2678 = vsel %vm2677, %v2656, %v2676
    %vm2679 = vcmask 1044484
    %v2680 = vsel %vm2679, %v2660, %v2678
    %vm2681 = vcmask 1045509
    %v2682 = vsel %vm2681, %v2664, %v2680
    %vm2683 = vcmask 1046534
    %v2684 = vsel %vm2683, %v2668, %v2682
    %vm2685 = vcmask 1047559
    %v2686 = vsel %vm2685, %v2672, %v2684
    %2688 = vxpose.xlu0.b32.start [1/16] %v2686, 128
    %2689 = vxpose.xlu0.b32.cont [2/16] 0.0, 128
    %2690 = vxpose.xlu0.b32.cont [3/16] 0.0, 128
    %2691 = vxpose.xlu0.b32.cont [4/16] 0.0, 128
    %2692 = vxpose.xlu0.b32.cont [5/16] 0.0, 128
    %2693 = vxpose.xlu0.b32.cont [6/16] 0.0, 128
    %2694 = vxpose.xlu0.b32.cont [7/16] 0.0, 128
    %2695 = vxpose.xlu0.b32.cont [8/16] 0.0, 128
    %2696 = vxpose.xlu0.b32.cont [9/16] 0.0, 128
    %2697 = vxpose.xlu0.b32.cont [10/16] 0.0, 128
    %2698 = vxpose.xlu0.b32.cont [11/16] 0.0, 128
    %2699 = vxpose.xlu0.b32.cont [12/16] 0.0, 128
    %2700 = vxpose.xlu0.b32.cont [13/16] 0.0, 128
    %2701 = vxpose.xlu0.b32.cont [14/16] 0.0, 128
    %2702 = vxpose.xlu0.b32.cont [15/16] 0.0, 128
    %2703 = vxpose.xlu0.b32.end [16/16] 0.0, 128
    %v2704 = vpop.trf.xlu0
    %v2705 = vpop.trf.xlu0
    %v2706 = vpop.trf.xlu0
    %v2707 = vpop.trf.xlu0
    %v2708 = vpop.trf.xlu0
    %v2709 = vpop.trf.xlu0
    %v2710 = vpop.trf.xlu0
    %v2711 = vpop.trf.xlu0
    %v2712 = vpop.trf.xlu0
    %v2713 = vpop.trf.xlu0
    %v2714 = vpop.trf.xlu0
    %v2715 = vpop.trf.xlu0
    %v2716 = vpop.trf.xlu0
    %v2717 = vpop.trf.xlu0
    %v2718 = vpop.trf.xlu0
    %v2719 = vpop.trf.xlu0
    %vm2720 = vcmask 64512
    %2721 = vst.msk [vmem:[#allocation6] sm:$0xff] %vm2720, %v2704
    // Predicated region
    $region22: #{tpu_custom_call.1} parent=1 // pred_check
      _
    $region23: #{tpu_custom_call.1} parent=1 // pred_check_branch
      %2723 = sbr.rel (0) target = $region25
    $region24: #{tpu_custom_call.1} parent=1 // pred_region
      %s2725 = ssub.s32 384, 384
      %2726 = vsyncadd [#allocation4], %s2725
      %s2728 = sshll.u32 [#allocation5], 4
      %s2729 = int_to_ptr.vmem [resolvable:$true] %s2728
      %2731 = dma.vmem_to_hbm [thread:$0]  %s2729, 384, %s4, [#allocation4]
    $region25: #{tpu_custom_call.1} parent=1 // pred_fallthru
      _
    // Predicated region
    $region26: #{tpu_custom_call.1} parent=1 // pred_check
      _
    $region27: #{tpu_custom_call.1} parent=1 // pred_check_branch
      %2733 = sbr.rel (0) target = $region29
    $region28: #{tpu_custom_call.1} parent=1 // pred_region
      %s2735 = ssub.s32 128, 128
      %2736 = vsyncadd [#allocation7], %s2735
      %s2738 = sshll.u32 [#allocation6], 4
      %s2739 = int_to_ptr.vmem [resolvable:$true] %s2738
      %2741 = dma.vmem_to_hbm [thread:$0]  %s2739, 128, %s5, [#allocation7]
    $region29: #{tpu_custom_call.1} parent=1 // pred_fallthru
      _
    // Predicated region
    $region30: #{tpu_custom_call.1} parent=1 // pred_check
      _
    $region31: #{tpu_custom_call.1} parent=1 // pred_check_branch
      %2743 = sbr.rel (0) target = $region33
    $region32: #{tpu_custom_call.1} parent=1 // pred_region
      %2744 = dma.done [#allocation4], 384
    $region33: #{tpu_custom_call.1} parent=1 // pred_fallthru
      _
    // Predicated region
    $region34: #{tpu_custom_call.1} parent=1 // pred_check
      _
    $region35: #{tpu_custom_call.1} parent=1 // pred_check_branch
      %2746 = sbr.rel (0) target = $region37
    $region36: #{tpu_custom_call.1} parent=1 // pred_region
      %2747 = dma.done [#allocation7], 128
    $region37: #{tpu_custom_call.1} parent=1 // pred_fallthru
      _
    %2748 = vsyncpa [#allocation3], 1
    %2749 = vsyncpa [#allocation4], 1
    %2750 = vsyncpa [#allocation7], 1

</llo_original>
